<compile_context>
chip_gen: v7x
topology: tpu7x:2x2x1
jax: 0.10.0
libtpu: 0.0.40
codegen_flags: <defaults>
</compile_context>

<pallas_src>
import jax
import jax.numpy as jnp
import numpy as np
from jax.experimental import pallas as pl
from jax.experimental.pallas import tpu as pltpu

LANE = 128


def _round_up(n, m):
    return ((n + m - 1) // m) * m


# ----------------------------------------------------------------------------
# Parameter packing (done once, outside the hot path): PyTorch layouts ->
# transposed bf16 matmul operands + f32 biases.  Only *output* dims are
# lane-padded (feat 32->128, classes 10->128); the conv contraction dim stays
# at its true K = C*9 so the per-image patch stream carries no zero padding.
# ----------------------------------------------------------------------------
def prepare_params(conv_w, conv_b, fc1_w, fc1_b, fc2_w, fc2_b):
    F, C, KH, KW = conv_w.shape
    CK = C * KH * KW
    hidden, feat_in = fc1_w.shape
    assert feat_in == F, "fc in_features must equal base-model feature dim"
    NC = fc2_w.shape[0]

    f_pad = _round_up(F, LANE)
    nc_pad = _round_up(NC, LANE)

    wc = conv_w.reshape(F, CK).T                               # [CK, F], K unpadded
    wc = jnp.pad(wc, ((0, 0), (0, f_pad - F))).astype(jnp.bfloat16)
    bc = jnp.pad(conv_b, (0, f_pad - F)).reshape(1, f_pad).astype(jnp.float32)

    w1 = fc1_w.T                                               # [F, hidden]
    w1 = jnp.pad(w1, ((0, f_pad - F), (0, 0))).astype(jnp.bfloat16)
    b1 = fc1_b.reshape(1, hidden).astype(jnp.float32)

    w2 = fc2_w.T                                               # [hidden, NC]
    w2 = jnp.pad(w2, ((0, 0), (0, nc_pad - NC))).astype(jnp.bfloat16)
    b2 = jnp.pad(fc2_b, (0, nc_pad - NC)).reshape(1, nc_pad).astype(jnp.float32)

    return (wc, bc, w1, b1, w2, b2)


# ----------------------------------------------------------------------------
# im2col for Conv2d(C->F, 3x3, pad=1): NCHW -> [B, H*W, C*9] bf16 (unpadded K),
# K ordering (c, dy, dx) matching conv_w.reshape(F, C*9).
# ----------------------------------------------------------------------------
def im2col_3x3_pad1(x_nchw):
    B, C, H, W = x_nchw.shape
    x = jnp.transpose(x_nchw, (0, 2, 3, 1))                    # NHWC (cheap)
    xp = jnp.pad(x, ((0, 0), (1, 1), (1, 1), (0, 0)))
    shifts = [xp[:, dy:dy + H, dx:dx + W, :]
              for dy in range(3) for dx in range(3)]
    p = jnp.stack(shifts, axis=-1)                             # [B, H, W, C, 9]
    p = p.reshape(B, H * W, C * 9)                             # k = c*9 + dy*3 + dx
    return p.astype(jnp.bfloat16)


# ----------------------------------------------------------------------------
# Fused forward: conv(3x3, pad=1)+bias+ReLU  ->  global-average-pool  ->
# Linear(F,1024)+ReLU -> Dropout(eval) -> Linear(1024,num_classes),
# one pallas_call, one grid step per image, batch axis fully parallel.
# ----------------------------------------------------------------------------
def cnn_forward(x, padded_params, num_classes):
    wc, bc, w1, b1, w2, b2 = padded_params
    B, C, H, W = x.shape
    HW = H * W
    ck, f_pad = wc.shape
    hidden = w1.shape[1]
    nc_pad = w2.shape[1]
    inv_hw = 1.0 / float(HW)

    patches = im2col_3x3_pad1(x)                               # [B, HW, ck] bf16

    def kernel(p_ref, wc_ref, bc_ref, w1_ref, b1_ref, w2_ref, b2_ref, o_ref):
        # Conv-as-matmul on this image's full row block; bias + ReLU in f32.
        y = jnp.dot(p_ref[0], wc_ref[...], preferred_element_type=jnp.float32)
        y = jnp.maximum(y + bc_ref[...], 0.0)                  # [HW, f_pad]

        # Global average pool -> this image's feature row.
        feats = jnp.sum(y, axis=0, keepdims=True) * jnp.float32(inv_hw)  # [1, f_pad]

        # fc head: Linear -> ReLU -> Dropout(eval: identity) -> Linear.
        h = jnp.dot(feats.astype(jnp.bfloat16), w1_ref[...],
                    preferred_element_type=jnp.float32)
        h = jnp.maximum(h + b1_ref[...], 0.0)
        o = jnp.dot(h.astype(jnp.bfloat16), w2_ref[...],
                    preferred_element_type=jnp.float32) + b2_ref[...]
        o_ref[...] = o.reshape(1, 1, nc_pad)

    out_pad = pl.pallas_call(
        kernel,
        out_shape=jax.ShapeDtypeStruct((B, 1, nc_pad), jnp.float32),
        grid_spec=pltpu.PrefetchScalarGridSpec(
            num_scalar_prefetch=0,
            grid=(B,),
            in_specs=[
                # One image's patch rows per step (auto double-buffered).
                pl.BlockSpec((1, HW, ck), lambda b: (b, 0, 0)),
                # VMEM-resident weights / biases (constant block index).
                pl.BlockSpec((ck, f_pad), lambda b: (0, 0)),
                pl.BlockSpec((1, f_pad), lambda b: (0, 0)),
                pl.BlockSpec((f_pad, hidden), lambda b: (0, 0)),
                pl.BlockSpec((1, hidden), lambda b: (0, 0)),
                pl.BlockSpec((hidden, nc_pad), lambda b: (0, 0)),
                pl.BlockSpec((1, nc_pad), lambda b: (0, 0)),
            ],
            # Lane-dense (128-wide) output block, fully written in its own step.
            out_specs=pl.BlockSpec((1, 1, nc_pad), lambda b: (b, 0, 0)),
        ),
        compiler_params=pltpu.CompilerParams(
            # Each grid step is self-contained (per-image GAP + head), so the
            # batch axis can be sharded across TensorCores on v7x.
            dimension_semantics=("parallel",),
        ),
    )(patches, wc, bc, w1, b1, w2, b2)

    return out_pad[:, 0, :num_classes]


# ----------------------------------------------------------------------------
# Pure-JAX reference (same bf16-matmul / f32-accumulate numerics)
# ----------------------------------------------------------------------------
def cnn_forward_ref(x, padded_params, num_classes):
    wc, bc, w1, b1, w2, b2 = padded_params
    p = im2col_3x3_pad1(x)                                     # [B, HW, ck] bf16
    y = jax.lax.dot_general(p, wc, (((2,), (0,)), ((), ())),
                            preferred_element_type=jnp.float32)
    y = jnp.maximum(y + bc, 0.0)
    feats = jnp.mean(y, axis=1)                                # [B, f_pad]
    h = jnp.maximum(
        jnp.dot(feats.astype(jnp.bfloat16), w1,
                preferred_element_type=jnp.float32) + b1, 0.0)
    o = jnp.dot(h.astype(jnp.bfloat16), w2,
                preferred_element_type=jnp.float32) + b2
    return o[:, :num_classes]


if __name__ == "__main__":
    # Small shapes consistent with the module's forward.
    B, C, H, W = 2, 4, 16, 16       # NCHW input images
    FEAT = 32                       # base-model feature dim == fc in_features
    HIDDEN = 1024                   # nn.Linear(in_features, 1024)
    NUM_CLASSES = 10

    key = jax.random.PRNGKey(0)
    kx, kwc, kbc, kw1, kb1, kw2, kb2 = jax.random.split(key, 7)

    x = jax.random.normal(kx, (B, C, H, W), dtype=jnp.float32)

    # Deterministic synthetic parameters in PyTorch layouts.
    conv_w = jax.random.normal(kwc, (FEAT, C, 3, 3), jnp.float32) / np.sqrt(C * 9)
    conv_b = jax.random.normal(kbc, (FEAT,), jnp.float32) * 0.01
    fc1_w = jax.random.normal(kw1, (HIDDEN, FEAT), jnp.float32) / np.sqrt(FEAT)
    fc1_b = jax.random.normal(kb1, (HIDDEN,), jnp.float32) * 0.01
    fc2_w = jax.random.normal(kw2, (NUM_CLASSES, HIDDEN), jnp.float32) / np.sqrt(HIDDEN)
    fc2_b = jax.random.normal(kb2, (NUM_CLASSES,), jnp.float32) * 0.01

    params = prepare_params(conv_w, conv_b, fc1_w, fc1_b, fc2_w, fc2_b)

    out = jax.block_until_ready(cnn_forward(x, params, NUM_CLASSES))
    ref = jax.block_until_ready(cnn_forward_ref(x, params, NUM_CLASSES))

    assert out.shape == (B, NUM_CLASSES)
    np.testing.assert_allclose(np.asarray(out), np.asarray(ref),
                               rtol=2e-2, atol=2e-2)
    print("KERNEL_OK")
</pallas_src>

<mosaic_0001>
module attributes {stable_mosaic.version = 11 : i64} {
  func.func @kernel(%arg0: i32, %arg1: memref<1x256x36xbf16, #tpu.memory_space<vmem>>, %arg2: memref<36x128xbf16, #tpu.memory_space<vmem>>, %arg3: memref<1x128xf32, #tpu.memory_space<vmem>>, %arg4: memref<128x1024xbf16, #tpu.memory_space<vmem>>, %arg5: memref<1x1024xf32, #tpu.memory_space<vmem>>, %arg6: memref<1024x128xbf16, #tpu.memory_space<vmem>>, %arg7: memref<1x128xf32, #tpu.memory_space<vmem>>, %arg8: memref<1x1x128xf32, #tpu.memory_space<vmem>>) attributes {dimension_semantics = [#tpu.dimension_semantics<parallel>], iteration_bounds = array<i64: 2>, scalar_prefetch = 0 : i64, scratch_operands = 0 : i64, tpu.core_type = #tpu.core_type<tc>, window_params = [{transform_indices = @transform_0, window_bounds = array<i64: 1, 256, 36>}, {pipeline_mode = #tpu.pipeline_mode<synchronous>, transform_indices = @transform_1, window_bounds = array<i64: 36, 128>}, {pipeline_mode = #tpu.pipeline_mode<synchronous>, transform_indices = @transform_2, window_bounds = array<i64: 1, 128>}, {pipeline_mode = #tpu.pipeline_mode<synchronous>, transform_indices = @transform_3, window_bounds = array<i64: 128, 1024>}, {pipeline_mode = #tpu.pipeline_mode<synchronous>, transform_indices = @transform_4, window_bounds = array<i64: 1, 1024>}, {pipeline_mode = #tpu.pipeline_mode<synchronous>, transform_indices = @transform_5, window_bounds = array<i64: 1024, 128>}, {pipeline_mode = #tpu.pipeline_mode<synchronous>, transform_indices = @transform_6, window_bounds = array<i64: 1, 128>}, {transform_indices = @transform_7, window_bounds = array<i64: 1, 1, 128>}]} {
    %c0 = arith.constant 0 : index
    %c0_0 = arith.constant 0 : index
    %c0_1 = arith.constant 0 : index
    %0 = vector.load %arg1[%c0, %c0_0, %c0_1] : memref<1x256x36xbf16, #tpu.memory_space<vmem>>, vector<1x256x36xbf16>
    %1 = vector.shape_cast %0 : vector<1x256x36xbf16> to vector<256x36xbf16>
    %c0_2 = arith.constant 0 : index
    %c0_3 = arith.constant 0 : index
    %2 = vector.load %arg2[%c0_2, %c0_3] : memref<36x128xbf16, #tpu.memory_space<vmem>>, vector<36x128xbf16>
    %cst = arith.constant dense<0.000000e+00> : vector<256x128xf32>
    %3 = tpu.matmul %1, %2, %cst {dimension_numbers = #tpu.dot_dimension_numbers<[1], [0], [0], [1], [0, 0, 1, 1], [], []>} : vector<256x36xbf16>, vector<36x128xbf16>, vector<256x128xf32> -> vector<256x128xf32>
    %c0_4 = arith.constant 0 : index
    %c0_5 = arith.constant 0 : index
    %4 = vector.load %arg3[%c0_4, %c0_5] : memref<1x128xf32, #tpu.memory_space<vmem>>, vector<1x128xf32>
    %5 = vector.broadcast %4 : vector<1x128xf32> to vector<256x128xf32>
    %6 = arith.addf %3, %5 : vector<256x128xf32>
    %cst_6 = arith.constant 0.000000e+00 : f32
    %7 = vector.broadcast %cst_6 : f32 to vector<256x128xf32>
    %8 = arith.maximumf %6, %7 : vector<256x128xf32>
    %cst_7 = arith.constant dense<0.000000e+00> : vector<128xf32>
    %9 = vector.multi_reduction <add>, %8, %cst_7 [0] : vector<256x128xf32> to vector<128xf32>
    %10 = vector.shape_cast %9 : vector<128xf32> to vector<1x128xf32>
    %cst_8 = arith.constant 3.906250e-03 : f32
    %11 = vector.broadcast %cst_8 : f32 to vector<1x128xf32>
    %12 = arith.mulf %10, %11 : vector<1x128xf32>
    %13 = arith.truncf %12 : vector<1x128xf32> to vector<1x128xbf16>
    %c0_9 = arith.constant 0 : index
    %c0_10 = arith.constant 0 : index
    %14 = vector.load %arg4[%c0_9, %c0_10] : memref<128x1024xbf16, #tpu.memory_space<vmem>>, vector<128x1024xbf16>
    %cst_11 = arith.constant dense<0.000000e+00> : vector<1x1024xf32>
    %15 = tpu.matmul %13, %14, %cst_11 {dimension_numbers = #tpu.dot_dimension_numbers<[1], [0], [0], [1], [0, 0, 1, 1], [], []>} : vector<1x128xbf16>, vector<128x1024xbf16>, vector<1x1024xf32> -> vector<1x1024xf32>
    %c0_12 = arith.constant 0 : index
    %c0_13 = arith.constant 0 : index
    %16 = vector.load %arg5[%c0_12, %c0_13] : memref<1x1024xf32, #tpu.memory_space<vmem>>, vector<1x1024xf32>
    %17 = arith.addf %15, %16 : vector<1x1024xf32>
    %cst_14 = arith.constant 0.000000e+00 : f32
    %18 = vector.broadcast %cst_14 : f32 to vector<1x1024xf32>
    %19 = arith.maximumf %17, %18 : vector<1x1024xf32>
    %20 = arith.truncf %19 : vector<1x1024xf32> to vector<1x1024xbf16>
    %c0_15 = arith.constant 0 : index
    %c0_16 = arith.constant 0 : index
    %21 = vector.load %arg6[%c0_15, %c0_16] : memref<1024x128xbf16, #tpu.memory_space<vmem>>, vector<1024x128xbf16>
    %cst_17 = arith.constant dense<0.000000e+00> : vector<1x128xf32>
    %22 = tpu.matmul %20, %21, %cst_17 {dimension_numbers = #tpu.dot_dimension_numbers<[1], [0], [0], [1], [0, 0, 1, 1], [], []>} : vector<1x1024xbf16>, vector<1024x128xbf16>, vector<1x128xf32> -> vector<1x128xf32>
    %c0_18 = arith.constant 0 : index
    %c0_19 = arith.constant 0 : index
    %23 = vector.load %arg7[%c0_18, %c0_19] : memref<1x128xf32, #tpu.memory_space<vmem>>, vector<1x128xf32>
    %24 = arith.addf %22, %23 : vector<1x128xf32>
    %25 = vector.shape_cast %24 : vector<1x128xf32> to vector<1x1x128xf32>
    %c0_20 = arith.constant 0 : index
    %c0_21 = arith.constant 0 : index
    %c0_22 = arith.constant 0 : index
    %26 = vector.load %arg8[%c0_20, %c0_21, %c0_22] : memref<1x1x128xf32, #tpu.memory_space<vmem>>, vector<1x1x128xf32>
    tpu.vector_store %arg8[%c0_20, %c0_21, %c0_22], %25 {strides = array<i32>} : memref<1x1x128xf32, #tpu.memory_space<vmem>>, vector<1x1x128xf32>,
    return
  }
  func.func @transform_0(%arg0: i32) -> (i32, i32, i32) {
    %c0_i32 = arith.constant 0 : i32
    %c0_i32_0 = arith.constant 0 : i32
    %c0_i32_1 = arith.constant 0 : i32
    return %arg0, %c0_i32, %c0_i32_0 : i32, i32, i32
  }
  func.func @transform_1(%arg0: i32) -> (i32, i32) {
    %c0_i32 = arith.constant 0 : i32
    %c0_i32_0 = arith.constant 0 : i32
    %c0_i32_1 = arith.constant 0 : i32
    return %c0_i32, %c0_i32_0 : i32, i32
  }
  func.func @transform_2(%arg0: i32) -> (i32, i32) {
    %c0_i32 = arith.constant 0 : i32
    %c0_i32_0 = arith.constant 0 : i32
    %c0_i32_1 = arith.constant 0 : i32
    return %c0_i32, %c0_i32_0 : i32, i32
  }
  func.func @transform_3(%arg0: i32) -> (i32, i32) {
    %c0_i32 = arith.constant 0 : i32
    %c0_i32_0 = arith.constant 0 : i32
    %c0_i32_1 = arith.constant 0 : i32
    return %c0_i32, %c0_i32_0 : i32, i32
  }
  func.func @transform_4(%arg0: i32) -> (i32, i32) {
    %c0_i32 = arith.constant 0 : i32
    %c0_i32_0 = arith.constant 0 : i32
    %c0_i32_1 = arith.constant 0 : i32
    return %c0_i32, %c0_i32_0 : i32, i32
  }
  func.func @transform_5(%arg0: i32) -> (i32, i32) {
    %c0_i32 = arith.constant 0 : i32
    %c0_i32_0 = arith.constant 0 : i32
    %c0_i32_1 = arith.constant 0 : i32
    return %c0_i32, %c0_i32_0 : i32, i32
  }
  func.func @transform_6(%arg0: i32) -> (i32, i32) {
    %c0_i32 = arith.constant 0 : i32
    %c0_i32_0 = arith.constant 0 : i32
    %c0_i32_1 = arith.constant 0 : i32
    return %c0_i32, %c0_i32_0 : i32, i32
  }
  func.func @transform_7(%arg0: i32) -> (i32, i32, i32) {
    %c0_i32 = arith.constant 0 : i32
    %c0_i32_0 = arith.constant 0 : i32
    %c0_i32_1 = arith.constant 0 : i32
    return %arg0, %c0_i32, %c0_i32_0 : i32, i32, i32
  }
}

</mosaic_0001>

<llo_original>
// kernel: tpu_custom_call.1
$region0: #{tpu_custom_call.1}
  #allocation0 [shape = 'u32[]', space=smem, size = 0x4, offset = 0x4, fixed_abs, tag = 'smem constant byte address 0x4 - core index']
  #allocation1 [shape = 'u32[144,128]{1,0:T(1,128)}', space=vmem, size = 0x12000, scoped, tag = 'internal scratch']
  %s0 = inlined_call_operand.vmem [shape: bf16[2,256,36], index: 0, kind: input, shape index: {}]
  %s1 = inlined_call_operand.vmem [shape: bf16[36,128], index: 1, kind: input, shape index: {}]
  %s2 = inlined_call_operand.vmem [shape: f32[1,128], index: 2, kind: input, shape index: {}]
  %s3 = inlined_call_operand.hbm [shape: bf16[128,1024], index: 3, kind: input, shape index: {}]
  %s4 = inlined_call_operand.vmem [shape: f32[1,1024], index: 4, kind: input, shape index: {}]
  %s5 = inlined_call_operand.hbm [shape: bf16[1024,128], index: 5, kind: input, shape index: {}]
  %s6 = inlined_call_operand.vmem [shape: f32[1,128], index: 6, kind: input, shape index: {}]
  %s7 = inlined_call_operand.hbm [shape: f32[2,1,128], index: 7, kind: output, shape index: {}]
  %s8 = sld [smem:[#allocation0]]
  $region69: #{tpu_custom_call.1} parent=0
    _
  %s10 = ssub.s32 1, %s8
  %s11 = scalar_select 0, %s10, %s8
  $region1: #{tpu_custom_call.1} parent=0
    #allocation2 [shape = 'u8[262144]{0}', space=vmem, size = 0x40000, scoped, tag = 'input window, operand 3, single buffered']
    #allocation3 [shape = 's32[2]{0}', space=sflag, size = 0x8, scoped, tag = 'scoped memory for tpu_custom_call.1']
    #allocation4 [shape = 's32[2]{0}', space=sflag, size = 0x8, scoped, tag = 'scoped memory for tpu_custom_call.1']
    #allocation5 [shape = 'u8[262144]{0}', space=vmem, size = 0x40000, scoped, tag = 'input window, operand 5, single buffered']
    #allocation6 [shape = 's32[1]{0}', space=sflag, size = 0x4, scoped, tag = 'scoped memory for tpu_custom_call.1']
    #allocation7 [shape = 'u8[1024]{0}', space=vmem, size = 0x400, scoped, tag = 'output window, operand 0']
    %12 = vsyncpa [#allocation3], 0
    %13 = vsyncpa [#allocation6], 0
    %14 = vsyncpa [#allocation4], 0
    %s15 = scalar_lea.sflag [#allocation4], 1
    %16 = vsyncpa %s15, 0
    loop: start=0, step=1, limit=4
    $region2: #{tpu_custom_call.1} parent=1 // loop_pre_header
      _
    $region3: #{tpu_custom_call.1} parent=1 // loop_header
      %s18 = sphi 0, %s22
      %p19 = scmp.ge.s32.totalorder %s18, 4
      %s28 = sphi 0, %s30
      %s31 = sphi 0, %s28
      %s32 = sphi 0, %s31
      %s48 = sphi 0, %s32
      %s52 = sphi 0, %s52
      %s54 = sphi 0, %s52
      %s55 = sphi 0, %s54
      %s69 = sphi 0, %s55
      %s73 = sphi 0, %s73
      %s75 = sphi 0, %s73
      %s76 = sphi 0, %s75
      %s90 = sphi 0, %s76
      %s94 = sphi 0, %s94
      %s96 = sphi 0, %s94
      %s97 = sphi 0, %s96
      %s111 = sphi 0, %s97
      %s115 = sphi 0, %s115
      %s117 = sphi 0, %s115
      %s118 = sphi 0, %s117
      %s132 = sphi 0, %s118
      %s136 = sphi 0, %s136
      %s138 = sphi 0, %s136
      %s139 = sphi 0, %s138
      %s153 = sphi 0, %s139
      %s157 = sphi 0, %s157
      %s159 = sphi 0, %s157
      %s160 = sphi 0, %s159
      %s174 = sphi 0, %s160
      %s180 = sphi 0, %s182
      %s183 = sphi 0, %s180
      %s184 = sphi 0, %s183
      %s200 = sphi 0, %s184
    $region4: #{tpu_custom_call.1} parent=1 // loop_header_branch
      %21 = sbr.rel (%p19) target = $region8
    $region5: #{tpu_custom_call.1} parent=1 // loop_body
      %s23 = ssub.s32 %s18, 1
      %s24 = ssub.s32 %s18, 2
      %s25 = sadd.s32 %s18, 1
      %s26 = ssub.s32 %s18, %s25
      %p27 = scmp.eq.s32.totalorder %s26, 0
      %s29 = sadd.s32 %s28, 1
      %s30 = scalar_select %p27, %s28, %s29
      %p33 = pneg %p27
      %p34 = scmp.eq.s32.totalorder %s18, 1
      %p35 = por %p33, %p34
      %p36 = scmp.ne.s32.totalorder %s28, %s31
      %p37 = scmp.eq.s32.totalorder %s18, 0
      %p38 = por %p36, %p37
      %p39 = scmp.ne.s32.totalorder %s28, %s31
      %p40 = scmp.eq.s32.totalorder %s23, 1
      %p41 = por %p39, %p40
      %p42 = scmp.ne.s32.totalorder %s31, %s32
      %p43 = scmp.eq.s32.totalorder %s23, 0
      %p44 = por %p42, %p43
      %p45 = scmp.ne.s32.totalorder %s31, %s32
      %p46 = scmp.eq.s32.totalorder %s24, 1
      %p47 = por %p45, %p46
      %p49 = scmp.ne.s32.totalorder %s32, %s48
      %p50 = scmp.eq.s32.totalorder %s24, 0
      %p51 = por %p49, %p50
      %s53 = sadd.s32 %s52, 1
      %p56 = scmp.eq.s32.totalorder %s18, 1
      %p57 = scmp.ne.s32.totalorder %s52, %s54
      %p58 = scmp.eq.s32.totalorder %s18, 0
      %p59 = por %p57, %p58
      %p60 = scmp.ne.s32.totalorder %s52, %s54
      %p61 = scmp.eq.s32.totalorder %s23, 1
      %p62 = por %p60, %p61
      %p63 = scmp.ne.s32.totalorder %s54, %s55
      %p64 = scmp.eq.s32.totalorder %s23, 0
      %p65 = por %p63, %p64
      %p66 = scmp.ne.s32.totalorder %s54, %s55
      %p67 = scmp.eq.s32.totalorder %s24, 1
      %p68 = por %p66, %p67
      %p70 = scmp.ne.s32.totalorder %s55, %s69
      %p71 = scmp.eq.s32.totalorder %s24, 0
      %p72 = por %p70, %p71
      %s74 = sadd.s32 %s73, 1
      %p77 = scmp.eq.s32.totalorder %s18, 1
      %p78 = scmp.ne.s32.totalorder %s73, %s75
      %p79 = scmp.eq.s32.totalorder %s18, 0
      %p80 = por %p78, %p79
      %p81 = scmp.ne.s32.totalorder %s73, %s75
      %p82 = scmp.eq.s32.totalorder %s23, 1
      %p83 = por %p81, %p82
      %p84 = scmp.ne.s32.totalorder %s75, %s76
      %p85 = scmp.eq.s32.totalorder %s23, 0
      %p86 = por %p84, %p85
      %p87 = scmp.ne.s32.totalorder %s75, %s76
      %p88 = scmp.eq.s32.totalorder %s24, 1
      %p89 = por %p87, %p88
      %p91 = scmp.ne.s32.totalorder %s76, %s90
      %p92 = scmp.eq.s32.totalorder %s24, 0
      %p93 = por %p91, %p92
      %s95 = sadd.s32 %s94, 1
      %p98 = scmp.eq.s32.totalorder %s18, 1
      %p99 = scmp.ne.s32.totalorder %s94, %s96
      %p100 = scmp.eq.s32.totalorder %s18, 0
      %p101 = por %p99, %p100
      %p102 = scmp.ne.s32.totalorder %s94, %s96
      %p103 = scmp.eq.s32.totalorder %s23, 1
      %p104 = por %p102, %p103
      %p105 = scmp.ne.s32.totalorder %s96, %s97
      %p106 = scmp.eq.s32.totalorder %s23, 0
      %p107 = por %p105, %p106
      %p108 = scmp.ne.s32.totalorder %s96, %s97
      %p109 = scmp.eq.s32.totalorder %s24, 1
      %p110 = por %p108, %p109
      %p112 = scmp.ne.s32.totalorder %s97, %s111
      %p113 = scmp.eq.s32.totalorder %s24, 0
      %p114 = por %p112, %p113
      %s116 = sadd.s32 %s115, 1
      %p119 = scmp.eq.s32.totalorder %s18, 1
      %p120 = scmp.ne.s32.totalorder %s115, %s117
      %p121 = scmp.eq.s32.totalorder %s18, 0
      %p122 = por %p120, %p121
      %p123 = scmp.ne.s32.totalorder %s115, %s117
      %p124 = scmp.eq.s32.totalorder %s23, 1
      %p125 = por %p123, %p124
      %p126 = scmp.ne.s32.totalorder %s117, %s118
      %p127 = scmp.eq.s32.totalorder %s23, 0
      %p128 = por %p126, %p127
      %p129 = scmp.ne.s32.totalorder %s117, %s118
      %p130 = scmp.eq.s32.totalorder %s24, 1
      %p131 = por %p129, %p130
      %p133 = scmp.ne.s32.totalorder %s118, %s132
      %p134 = scmp.eq.s32.totalorder %s24, 0
      %p135 = por %p133, %p134
      %s137 = sadd.s32 %s136, 1
      %p140 = scmp.eq.s32.totalorder %s18, 1
      %p141 = scmp.ne.s32.totalorder %s136, %s138
      %p142 = scmp.eq.s32.totalorder %s18, 0
      %p143 = por %p141, %p142
      %p144 = scmp.ne.s32.totalorder %s136, %s138
      %p145 = scmp.eq.s32.totalorder %s23, 1
      %p146 = por %p144, %p145
      %p147 = scmp.ne.s32.totalorder %s138, %s139
      %p148 = scmp.eq.s32.totalorder %s23, 0
      %p149 = por %p147, %p148
      %p150 = scmp.ne.s32.totalorder %s138, %s139
      %p151 = scmp.eq.s32.totalorder %s24, 1
      %p152 = por %p150, %p151
      %p154 = scmp.ne.s32.totalorder %s139, %s153
      %p155 = scmp.eq.s32.totalorder %s24, 0
      %p156 = por %p154, %p155
      %s158 = sadd.s32 %s157, 1
      %p161 = scmp.eq.s32.totalorder %s18, 1
      %p162 = scmp.ne.s32.totalorder %s157, %s159
      %p163 = scmp.eq.s32.totalorder %s18, 0
      %p164 = por %p162, %p163
      %p165 = scmp.ne.s32.totalorder %s157, %s159
      %p166 = scmp.eq.s32.totalorder %s23, 1
      %p167 = por %p165, %p166
      %p168 = scmp.ne.s32.totalorder %s159, %s160
      %p169 = scmp.eq.s32.totalorder %s23, 0
      %p170 = por %p168, %p169
      %p171 = scmp.ne.s32.totalorder %s159, %s160
      %p172 = scmp.eq.s32.totalorder %s24, 1
      %p173 = por %p171, %p172
      %p175 = scmp.ne.s32.totalorder %s160, %s174
      %p176 = scmp.eq.s32.totalorder %s24, 0
      %p177 = por %p175, %p176
      %s178 = ssub.s32 %s18, %s25
      %p179 = scmp.eq.s32.totalorder %s178, 0
      %s181 = sadd.s32 %s180, 1
      %s182 = scalar_select %p179, %s180, %s181
      %p185 = pneg %p179
      %p186 = scmp.eq.s32.totalorder %s18, 1
      %p187 = por %p185, %p186
      %p188 = scmp.ne.s32.totalorder %s180, %s183
      %p189 = scmp.eq.s32.totalorder %s18, 0
      %p190 = por %p188, %p189
      %p191 = scmp.ne.s32.totalorder %s180, %s183
      %p192 = scmp.eq.s32.totalorder %s23, 1
      %p193 = por %p191, %p192
      %p194 = scmp.ne.s32.totalorder %s183, %s184
      %p195 = scmp.eq.s32.totalorder %s23, 0
      %p196 = por %p194, %p195
      %p197 = scmp.ne.s32.totalorder %s183, %s184
      %p198 = scmp.eq.s32.totalorder %s24, 1
      %p199 = por %p197, %p198
      %p201 = scmp.ne.s32.totalorder %s184, %s200
      %p202 = scmp.eq.s32.totalorder %s24, 0
      %p203 = por %p201, %p202
      %p204 = scmp.le.s32.totalorder 1, %s18
      %p205 = scmp.lt.s32.totalorder %s18, 3
      %p206 = pnand %p204, %p205
      %p207 = pneg %p206
      // Predicated region
      $region9: #{tpu_custom_call.1} parent=5 // pred_check
        _
      $region10: #{tpu_custom_call.1} parent=5 // pred_check_branch
        %209 = sbr.rel (%p206) target = $region12
      $region11: #{tpu_custom_call.1} parent=5 // pred_region
        %s210 = ssub.s32 %s18, 1
        // Predicated region
        $region13: #{tpu_custom_call.1} parent=11 // pred_check
          %p211 = pneg %p65
        $region14: #{tpu_custom_call.1} parent=11 // pred_check_branch
          %213 = sbr.rel (%p211) target = $region16
        $region15: #{tpu_custom_call.1} parent=11 // pred_region
          _
        $region16: #{tpu_custom_call.1} parent=11 // pred_fallthru
          _
        // Predicated region
        $region17: #{tpu_custom_call.1} parent=11 // pred_check
          %p214 = pneg %p86
        $region18: #{tpu_custom_call.1} parent=11 // pred_check_branch
          %216 = sbr.rel (%p214) target = $region20
        $region19: #{tpu_custom_call.1} parent=11 // pred_region
          _
        $region20: #{tpu_custom_call.1} parent=11 // pred_fallthru
          _
        // Predicated region
        $region21: #{tpu_custom_call.1} parent=11 // pred_check
          %p217 = pneg %p107
        $region22: #{tpu_custom_call.1} parent=11 // pred_check_branch
          %219 = sbr.rel (%p217) target = $region24
        $region23: #{tpu_custom_call.1} parent=11 // pred_region
          %s221 = ssub.s32 8192, 8192
          %222 = vsyncadd [#allocation3], %s221
          %s223 = sshll.u32 [#allocation2], 4
          %s224 = int_to_ptr.vmem [resolvable:$true] %s223
          %229 = dma.hbm_to_vmem [thread:$0]  %s3, 8192, %s224, [#allocation3], 512, 512, 32
        $region24: #{tpu_custom_call.1} parent=11 // pred_fallthru
          _
        // Predicated region
        $region25: #{tpu_custom_call.1} parent=11 // pred_check
          %p230 = pneg %p128
        $region26: #{tpu_custom_call.1} parent=11 // pred_check_branch
          %232 = sbr.rel (%p230) target = $region28
        $region27: #{tpu_custom_call.1} parent=11 // pred_region
          _
        $region28: #{tpu_custom_call.1} parent=11 // pred_fallthru
          _
        // Predicated region
        $region29: #{tpu_custom_call.1} parent=11 // pred_check
          %p233 = pneg %p149
        $region30: #{tpu_custom_call.1} parent=11 // pred_check_branch
          %235 = sbr.rel (%p233) target = $region32
        $region31: #{tpu_custom_call.1} parent=11 // pred_region
          %s237 = ssub.s32 8192, 8192
          %238 = vsyncadd [#allocation6], %s237
          %s239 = sshll.u32 [#allocation5], 4
          %s240 = int_to_ptr.vmem [resolvable:$true] %s239
          %245 = dma.hbm_to_vmem [thread:$0]  %s5, 8192, %s240, [#allocation6], 64, 64, 4
        $region32: #{tpu_custom_call.1} parent=11 // pred_fallthru
          _
        // Predicated region
        $region33: #{tpu_custom_call.1} parent=11 // pred_check
          %p246 = pneg %p170
        $region34: #{tpu_custom_call.1} parent=11 // pred_check_branch
          %248 = sbr.rel (%p246) target = $region36
        $region35: #{tpu_custom_call.1} parent=11 // pred_region
          _
        $region36: #{tpu_custom_call.1} parent=11 // pred_fallthru
          _
      $region12: #{tpu_custom_call.1} parent=5 // pred_fallthru
        _
      %p249 = scmp.lt.s32.totalorder %s18, 2
      // Predicated region
      $region37: #{tpu_custom_call.1} parent=5 // pred_check
        %p250 = pneg %p249
      $region38: #{tpu_custom_call.1} parent=5 // pred_check_branch
        %252 = sbr.rel (%p250) target = $region40
      $region39: #{tpu_custom_call.1} parent=5 // pred_region
        // Predicated region
        $region41: #{tpu_custom_call.1} parent=39 // pred_check
          %p253 = pneg %p38
        $region42: #{tpu_custom_call.1} parent=39 // pred_check_branch
          %255 = sbr.rel (%p253) target = $region44
        $region43: #{tpu_custom_call.1} parent=39 // pred_region
          %p256 = scmp.lt.s32.totalorder %s18, 1
          %s257 = scalar_select %p256, %s18, 1
          %s258 = smul.addr %s257, 32
          %s259 = smul.addr %s258, 4
          %s260 = scalar_lea.vmem %s0, %s259
        $region44: #{tpu_custom_call.1} parent=39 // pred_fallthru
          _
      $region40: #{tpu_custom_call.1} parent=5 // pred_fallthru
        _
      %p261 = scmp.le.s32.totalorder 1, %s18
      %p262 = scmp.lt.s32.totalorder %s18, 3
      %p263 = pnand %p261, %p262
      %p264 = pneg %p263
      // Predicated region
      $region45: #{tpu_custom_call.1} parent=5 // pred_check
        _
      $region46: #{tpu_custom_call.1} parent=5 // pred_check_branch
        %266 = sbr.rel (%p263) target = $region48
      $region47: #{tpu_custom_call.1} parent=5 // pred_region
        %s267 = ssub.s32 %s18, 1
        // Predicated region
        $region49: #{tpu_custom_call.1} parent=47 // pred_check
          %p268 = pneg %p107
        $region50: #{tpu_custom_call.1} parent=47 // pred_check_branch
          %270 = sbr.rel (%p268) target = $region52
        $region51: #{tpu_custom_call.1} parent=47 // pred_region
          %271 = dma.done [#allocation3], 8192
        $region52: #{tpu_custom_call.1} parent=47 // pred_fallthru
          _
        // Predicated region
        $region53: #{tpu_custom_call.1} parent=47 // pred_check
          %p272 = pneg %p149
        $region54: #{tpu_custom_call.1} parent=47 // pred_check_branch
          %274 = sbr.rel (%p272) target = $region56
        $region55: #{tpu_custom_call.1} parent=47 // pred_region
          %275 = dma.done [#allocation6], 8192
        $region56: #{tpu_custom_call.1} parent=47 // pred_fallthru
          _
        %p276 = scmp.lt.s32.totalorder %s23, 1
        %s277 = scalar_select %p276, %s23, 1
        %s278 = smul.addr %s277, 32
        %s279 = smul.addr %s278, 4
        %s280 = scalar_lea.vmem %s0, %s279
        %p281 = pneg %p44
        %p282 = pneg %p41
        %p283 = pneg %p65
        %p284 = pneg %p62
        %p285 = pneg %p86
        %p286 = pneg %p83
        %p287 = pneg %p107
        %p288 = pneg %p104
        %p289 = pneg %p128
        %p290 = pneg %p125
        %p291 = pneg %p149
        %p292 = pneg %p146
        %p293 = pneg %p170
        %p294 = pneg %p167
        %p295 = pneg %p196
        %p296 = pneg %p193
        %s297 = sand.u32 %s183, 1
        %s298 = scalar_lea.sflag [#allocation4], %s297
        %s299 = sand.u32 %s183, 1
        %s300 = scalar_lea.vmem [#allocation7], %s299
        %p301 = scmp.lt.s32.totalorder %s23, 1
        %s302 = scalar_select %p301, %s23, 1
        %s303 = smul.addr %s302, 32
        %s304 = smul.addr %s303, 4
        %s305 = scalar_lea.vmem %s0, %s304
        %v307 = vld [vmem:[%s305] sm:$0xf]
        %v308 = vld [vmem:[%s305 + $0x4] sm:$0xf]
        %v309 = vld [vmem:[%s305 + $0x8] sm:$0xf]
        %v310 = vld [vmem:[%s305 + $0xc] sm:$0xf]
        %v311 = vld [vmem:[%s305 + $0x10] sm:$0xf]
        %v312 = vld [vmem:[%s305 + $0x14] sm:$0xf]
        %v313 = vld [vmem:[%s305 + $0x18] sm:$0xf]
        %v314 = vld [vmem:[%s305 + $0x1c] sm:$0xf]
        %v315 = vld [vmem:[%s305 + $0x20] sm:$0xf]
        %v316 = vld [vmem:[%s305 + $0x24] sm:$0xf]
        %v317 = vld [vmem:[%s305 + $0x28] sm:$0xf]
        %v318 = vld [vmem:[%s305 + $0x2c] sm:$0xf]
        %v319 = vld [vmem:[%s305 + $0x30] sm:$0xf]
        %v320 = vld [vmem:[%s305 + $0x34] sm:$0xf]
        %v321 = vld [vmem:[%s305 + $0x38] sm:$0xf]
        %v322 = vld [vmem:[%s305 + $0x3c] sm:$0xf]
        %v323 = vld [vmem:[%s305 + $0x40] sm:$0xf]
        %v324 = vld [vmem:[%s305 + $0x44] sm:$0xf]
        %v325 = vld [vmem:[%s305 + $0x48] sm:$0xf]
        %v326 = vld [vmem:[%s305 + $0x4c] sm:$0xf]
        %v327 = vld [vmem:[%s305 + $0x50] sm:$0xf]
        %v328 = vld [vmem:[%s305 + $0x54] sm:$0xf]
        %v329 = vld [vmem:[%s305 + $0x58] sm:$0xf]
        %v330 = vld [vmem:[%s305 + $0x5c] sm:$0xf]
        %v331 = vld [vmem:[%s305 + $0x60] sm:$0xf]
        %v332 = vld [vmem:[%s305 + $0x64] sm:$0xf]
        %v333 = vld [vmem:[%s305 + $0x68] sm:$0xf]
        %v334 = vld [vmem:[%s305 + $0x6c] sm:$0xf]
        %v335 = vld [vmem:[%s305 + $0x70] sm:$0xf]
        %v336 = vld [vmem:[%s305 + $0x74] sm:$0xf]
        %v337 = vld [vmem:[%s305 + $0x78] sm:$0xf]
        %v338 = vld [vmem:[%s305 + $0x7c] sm:$0xf]
        %v339 = vld [vmem:[%s1] sm:$0xf]
        %v340 = vld [vmem:[%s1 + $0x4] sm:$0xf]
        %v341 = vld [vmem:[%s1 + $0x8] sm:$0xf]
        %v342 = vld [vmem:[%s1 + $0xc] sm:$0xf]
        %v343 = vld [vmem:[%s1 + $0x10] sm:$0x3]
        %v344 = vld [vmem:[%s2] sm:$0x1]
        %v346 = vlaneseq
        %v347 = vshrl.u32 %v346, 7
        %v348 = vsub.s32 0, %v347
        %v349 = vrot.slane %v344, %v348
        %v383 = vunpack.c.l.b16 %v307
        %v384 = vunpack.c.l.b16 %v308
        %v385 = vunpack.c.l.b16 %v309
        %v386 = vunpack.c.l.b16 %v310
        %v387 = vunpack.c.l.b16 %v311
        %v388 = vunpack.c.l.b16 %v312
        %v389 = vunpack.c.l.b16 %v313
        %v390 = vunpack.c.l.b16 %v314
        %v391 = vunpack.c.l.b16 %v315
        %v392 = vunpack.c.l.b16 %v316
        %v393 = vunpack.c.l.b16 %v317
        %v394 = vunpack.c.l.b16 %v318
        %v395 = vunpack.c.l.b16 %v319
        %v396 = vunpack.c.l.b16 %v320
        %v397 = vunpack.c.l.b16 %v321
        %v398 = vunpack.c.l.b16 %v322
        %v399 = vunpack.c.l.b16 %v323
        %v400 = vunpack.c.l.b16 %v324
        %v401 = vunpack.c.l.b16 %v325
        %v402 = vunpack.c.l.b16 %v326
        %v403 = vunpack.c.l.b16 %v327
        %v404 = vunpack.c.l.b16 %v328
        %v405 = vunpack.c.l.b16 %v329
        %v406 = vunpack.c.l.b16 %v330
        %v407 = vunpack.c.l.b16 %v331
        %v408 = vunpack.c.l.b16 %v332
        %v409 = vunpack.c.l.b16 %v333
        %v410 = vunpack.c.l.b16 %v334
        %v411 = vunpack.c.l.b16 %v335
        %v412 = vunpack.c.l.b16 %v336
        %v413 = vunpack.c.l.b16 %v337
        %v414 = vunpack.c.l.b16 %v338
        %v415 = vpack.c.b16 %v384, %v383
        %v416 = vpack.c.b16 %v386, %v385
        %v417 = vpack.c.b16 %v388, %v387
        %v418 = vpack.c.b16 %v390, %v389
        %v419 = vpack.c.b16 %v392, %v391
        %v420 = vpack.c.b16 %v394, %v393
        %v421 = vpack.c.b16 %v396, %v395
        %v422 = vpack.c.b16 %v398, %v397
        %v423 = vpack.c.b16 %v400, %v399
        %v424 = vpack.c.b16 %v402, %v401
        %v425 = vpack.c.b16 %v404, %v403
        %v426 = vpack.c.b16 %v406, %v405
        %v427 = vpack.c.b16 %v408, %v407
        %v428 = vpack.c.b16 %v410, %v409
        %v429 = vpack.c.b16 %v412, %v411
        %v430 = vpack.c.b16 %v414, %v413
        %v436 = vunpack.c.l.b16 %v339
        %v437 = vunpack.c.l.b16 %v340
        %v438 = vunpack.c.l.b16 %v341
        %v439 = vunpack.c.l.b16 %v342
        %v440 = vunpack.c.l.b16 %v343
        %v441 = vpack.c.b16 %v437, %v436
        %v442 = vpack.c.b16 %v439, %v438
        %v443 = vpack.c.b16 %v440, %v440
        %vm446 = vcmask 293888
        %v448 = vsel %vm446, %v415, 0
        %v451 = vsel %vm446, %v416, 0
        %v454 = vsel %vm446, %v417, 0
        %v457 = vsel %vm446, %v418, 0
        %v460 = vsel %vm446, %v419, 0
        %v463 = vsel %vm446, %v420, 0
        %v466 = vsel %vm446, %v421, 0
        %v469 = vsel %vm446, %v422, 0
        %v472 = vsel %vm446, %v423, 0
        %v475 = vsel %vm446, %v424, 0
        %v478 = vsel %vm446, %v425, 0
        %v481 = vsel %vm446, %v426, 0
        %v484 = vsel %vm446, %v427, 0
        %v487 = vsel %vm446, %v428, 0
        %v490 = vsel %vm446, %v429, 0
        %v493 = vsel %vm446, %v430, 0
        %vm495 = vcmask 1041408
        %v497 = vsel %vm495, %v443, 0
        %499 = vmatprep.subr.bf16.mxu0 0
        %500 = vmatpush1.bf16.msra.mxu0 %v441
        %501 = vmatprep.subr.bf16.mxu0 0
        %502 = vmatpush1.bf16.msra.mxu0 %v442
        %503 = vmatprep.subr.bf16.mxu0 0
        %504 = vmatpush1.bf16.msra.mxu0 %v497
        %505 = vmatprep.subr.bf16.mxu0 0
        %506 = vmatpush1.bf16.msra.mxu0 0
        %507 = vmatprep.subr.bf16.mxu0 0
        %508 = vmatpush1.bf16.msra.mxu0 0
        %509 = vmatprep.subr.bf16.mxu0 0
        %510 = vmatpush1.bf16.msra.mxu0 0
        %511 = vmatprep.subr.bf16.mxu0 0
        %512 = vmatpush1.bf16.msra.mxu0 0
        %513 = vmatprep.subr.bf16.mxu0 0
        %514 = vmatpush1.bf16.msra.mxu0 0
        %515 = vmatprep.subr.bf16.mxu0 0
        %516 = vmatpush1.bf16.msra.mxu0 0
        %517 = vmatprep.subr.bf16.mxu0 0
        %518 = vmatpush1.bf16.msra.mxu0 0
        %519 = vmatprep.subr.bf16.mxu0 0
        %520 = vmatpush1.bf16.msra.mxu0 0
        %521 = vmatprep.subr.bf16.mxu0 0
        %522 = vmatpush1.bf16.msra.mxu0 0
        %523 = vmatprep.subr.bf16.mxu0 0
        %524 = vmatpush1.bf16.msra.mxu0 0
        %525 = vmatprep.subr.bf16.mxu0 0
        %526 = vmatpush1.bf16.msra.mxu0 0
        %527 = vmatprep.subr.bf16.mxu0 0
        %528 = vmatpush1.bf16.msra.mxu0 0
        %529 = vmatprep.subr.bf16.mxu0 0
        %530 = vmatpush1.bf16.msra.mxu0 0
        %531 = vmatprep.mubr.bf16.mxu0 0
        %532 = vmatmul.mubr.bf16.gmra.mrb[0].mxu0 %v448
        %v533 = vpop.f32.mrb[0].mxu0
        %v534 = vadd.f32 %v349, %v533
        %v535 = vpop.f32.mrb[0].mxu0
        %v536 = vpop.f32.mrb[0].mxu0
        %v537 = vadd.f32 %v349, %v536
        %v538 = vpop.f32.mrb[0].mxu0
        %539 = vmatprep.mubr.bf16.mxu0 0
        %540 = vmatmul.mubr.bf16.gmra.mrb[0].mxu0 %v451
        %v541 = vpop.f32.mrb[0].mxu0
        %v542 = vadd.f32 %v349, %v541
        %v543 = vpop.f32.mrb[0].mxu0
        %v544 = vpop.f32.mrb[0].mxu0
        %v545 = vadd.f32 %v349, %v544
        %v546 = vpop.f32.mrb[0].mxu0
        %547 = vmatprep.mubr.bf16.mxu0 0
        %548 = vmatmul.mubr.bf16.gmra.mrb[0].mxu0 %v454
        %v549 = vpop.f32.mrb[0].mxu0
        %v550 = vadd.f32 %v349, %v549
        %v551 = vpop.f32.mrb[0].mxu0
        %v552 = vpop.f32.mrb[0].mxu0
        %v553 = vadd.f32 %v349, %v552
        %v554 = vpop.f32.mrb[0].mxu0
        %555 = vmatprep.mubr.bf16.mxu0 0
        %556 = vmatmul.mubr.bf16.gmra.mrb[0].mxu0 %v457
        %v557 = vpop.f32.mrb[0].mxu0
        %v558 = vadd.f32 %v349, %v557
        %v559 = vpop.f32.mrb[0].mxu0
        %v560 = vpop.f32.mrb[0].mxu0
        %v561 = vadd.f32 %v349, %v560
        %v562 = vpop.f32.mrb[0].mxu0
        %563 = vmatprep.mubr.bf16.mxu0 0
        %564 = vmatmul.mubr.bf16.gmra.mrb[0].mxu0 %v460
        %v565 = vpop.f32.mrb[0].mxu0
        %v566 = vadd.f32 %v349, %v565
        %v567 = vpop.f32.mrb[0].mxu0
        %v568 = vpop.f32.mrb[0].mxu0
        %v569 = vadd.f32 %v349, %v568
        %v570 = vpop.f32.mrb[0].mxu0
        %571 = vmatprep.mubr.bf16.mxu0 0
        %572 = vmatmul.mubr.bf16.gmra.mrb[0].mxu0 %v463
        %v573 = vpop.f32.mrb[0].mxu0
        %v574 = vadd.f32 %v349, %v573
        %v575 = vpop.f32.mrb[0].mxu0
        %v576 = vpop.f32.mrb[0].mxu0
        %v577 = vadd.f32 %v349, %v576
        %v578 = vpop.f32.mrb[0].mxu0
        %579 = vmatprep.mubr.bf16.mxu0 0
        %580 = vmatmul.mubr.bf16.gmra.mrb[0].mxu0 %v466
        %v581 = vpop.f32.mrb[0].mxu0
        %v582 = vadd.f32 %v349, %v581
        %v583 = vpop.f32.mrb[0].mxu0
        %v584 = vpop.f32.mrb[0].mxu0
        %v585 = vadd.f32 %v349, %v584
        %v586 = vpop.f32.mrb[0].mxu0
        %587 = vmatprep.mubr.bf16.mxu0 0
        %588 = vmatmul.mubr.bf16.gmra.mrb[0].mxu0 %v469
        %v589 = vpop.f32.mrb[0].mxu0
        %v590 = vadd.f32 %v349, %v589
        %v591 = vpop.f32.mrb[0].mxu0
        %v592 = vpop.f32.mrb[0].mxu0
        %v593 = vadd.f32 %v349, %v592
        %v594 = vpop.f32.mrb[0].mxu0
        %595 = vmatprep.mubr.bf16.mxu0 0
        %596 = vmatmul.mubr.bf16.gmra.mrb[0].mxu0 %v472
        %v597 = vpop.f32.mrb[0].mxu0
        %v598 = vadd.f32 %v349, %v597
        %v599 = vpop.f32.mrb[0].mxu0
        %v600 = vpop.f32.mrb[0].mxu0
        %v601 = vadd.f32 %v349, %v600
        %v602 = vpop.f32.mrb[0].mxu0
        %603 = vmatprep.mubr.bf16.mxu0 0
        %604 = vmatmul.mubr.bf16.gmra.mrb[0].mxu0 %v475
        %v605 = vpop.f32.mrb[0].mxu0
        %v606 = vadd.f32 %v349, %v605
        %v607 = vpop.f32.mrb[0].mxu0
        %v608 = vpop.f32.mrb[0].mxu0
        %v609 = vadd.f32 %v349, %v608
        %v610 = vpop.f32.mrb[0].mxu0
        %611 = vmatprep.mubr.bf16.mxu0 0
        %612 = vmatmul.mubr.bf16.gmra.mrb[0].mxu0 %v478
        %v613 = vpop.f32.mrb[0].mxu0
        %v614 = vadd.f32 %v349, %v613
        %v615 = vpop.f32.mrb[0].mxu0
        %v616 = vpop.f32.mrb[0].mxu0
        %v617 = vadd.f32 %v349, %v616
        %v618 = vpop.f32.mrb[0].mxu0
        %619 = vmatprep.mubr.bf16.mxu0 0
        %620 = vmatmul.mubr.bf16.gmra.mrb[0].mxu0 %v481
        %v621 = vpop.f32.mrb[0].mxu0
        %v622 = vadd.f32 %v349, %v621
        %v623 = vpop.f32.mrb[0].mxu0
        %v624 = vpop.f32.mrb[0].mxu0
        %v625 = vadd.f32 %v349, %v624
        %v626 = vpop.f32.mrb[0].mxu0
        %627 = vmatprep.mubr.bf16.mxu0 0
        %628 = vmatmul.mubr.bf16.gmra.mrb[0].mxu0 %v484
        %v629 = vpop.f32.mrb[0].mxu0
        %v630 = vadd.f32 %v349, %v629
        %v631 = vpop.f32.mrb[0].mxu0
        %v632 = vpop.f32.mrb[0].mxu0
        %v633 = vadd.f32 %v349, %v632
        %v634 = vpop.f32.mrb[0].mxu0
        %635 = vmatprep.mubr.bf16.mxu0 0
        %636 = vmatmul.mubr.bf16.gmra.mrb[0].mxu0 %v487
        %v637 = vpop.f32.mrb[0].mxu0
        %v638 = vadd.f32 %v349, %v637
        %v639 = vpop.f32.mrb[0].mxu0
        %v640 = vpop.f32.mrb[0].mxu0
        %v641 = vadd.f32 %v349, %v640
        %v642 = vpop.f32.mrb[0].mxu0
        %643 = vmatprep.mubr.bf16.mxu0 0
        %644 = vmatmul.mubr.bf16.gmra.mrb[0].mxu0 %v490
        %v645 = vpop.f32.mrb[0].mxu0
        %v646 = vadd.f32 %v349, %v645
        %v647 = vpop.f32.mrb[0].mxu0
        %v648 = vpop.f32.mrb[0].mxu0
        %v649 = vadd.f32 %v349, %v648
        %v650 = vpop.f32.mrb[0].mxu0
        %651 = vmatprep.mubr.bf16.mxu0 0
        %652 = vmatmul.mubr.bf16.gmra.mrb[0].mxu0 %v493
        %v653 = vpop.f32.mrb[0].mxu0
        %v654 = vadd.f32 %v349, %v653
        %v655 = vpop.f32.mrb[0].mxu0
        %v656 = vpop.f32.mrb[0].mxu0
        %v657 = vadd.f32 %v349, %v656
        %v658 = vpop.f32.mrb[0].mxu0
        %659 = vdwg.mxu0
        %v660 = vmax.f32 %v534, 0.0
        %v661 = vmax.f32 %v537, 0.0
        %v662 = vmax.f32 %v542, 0.0
        %v663 = vmax.f32 %v545, 0.0
        %v664 = vmax.f32 %v550, 0.0
        %v665 = vmax.f32 %v553, 0.0
        %v666 = vmax.f32 %v558, 0.0
        %v667 = vmax.f32 %v561, 0.0
        %v668 = vmax.f32 %v566, 0.0
        %v669 = vmax.f32 %v569, 0.0
        %v670 = vmax.f32 %v574, 0.0
        %v671 = vmax.f32 %v577, 0.0
        %v672 = vmax.f32 %v582, 0.0
        %v673 = vmax.f32 %v585, 0.0
        %v674 = vmax.f32 %v590, 0.0
        %v675 = vmax.f32 %v593, 0.0
        %v676 = vmax.f32 %v598, 0.0
        %v677 = vmax.f32 %v601, 0.0
        %v678 = vmax.f32 %v606, 0.0
        %v679 = vmax.f32 %v609, 0.0
        %v680 = vmax.f32 %v614, 0.0
        %v681 = vmax.f32 %v617, 0.0
        %v682 = vmax.f32 %v622, 0.0
        %v683 = vmax.f32 %v625, 0.0
        %v684 = vmax.f32 %v630, 0.0
        %v685 = vmax.f32 %v633, 0.0
        %v686 = vmax.f32 %v638, 0.0
        %v687 = vmax.f32 %v641, 0.0
        %v688 = vmax.f32 %v646, 0.0
        %v689 = vmax.f32 %v649, 0.0
        %v690 = vmax.f32 %v654, 0.0
        %v691 = vmax.f32 %v657, 0.0
        %v692 = vadd.f32 %v660, %v661
        %v693 = vadd.f32 %v692, %v662
        %v694 = vadd.f32 %v693, %v663
        %v695 = vadd.f32 %v694, %v664
        %v696 = vadd.f32 %v695, %v665
        %v697 = vadd.f32 %v696, %v666
        %v698 = vadd.f32 %v697, %v667
        %v699 = vadd.f32 %v698, %v668
        %v700 = vadd.f32 %v699, %v669
        %v701 = vadd.f32 %v700, %v670
        %v702 = vadd.f32 %v701, %v671
        %v703 = vadd.f32 %v702, %v672
        %v704 = vadd.f32 %v703, %v673
        %v705 = vadd.f32 %v704, %v674
        %v706 = vadd.f32 %v705, %v675
        %v707 = vadd.f32 %v706, %v676
        %v708 = vadd.f32 %v707, %v677
        %v709 = vadd.f32 %v708, %v678
        %v710 = vadd.f32 %v709, %v679
        %v711 = vadd.f32 %v710, %v680
        %v712 = vadd.f32 %v711, %v681
        %v713 = vadd.f32 %v712, %v682
        %v714 = vadd.f32 %v713, %v683
        %v715 = vadd.f32 %v714, %v684
        %v716 = vadd.f32 %v715, %v685
        %v717 = vadd.f32 %v716, %v686
        %v718 = vadd.f32 %v717, %v687
        %v719 = vadd.f32 %v718, %v688
        %v720 = vadd.f32 %v719, %v689
        %v721 = vadd.f32 %v720, %v690
        %v722 = vadd.f32 %v721, %v691
        %v723 = vrot.slane %v722, 4
        %v724 = vadd.f32 %v722, %v723
        %v725 = vrot.slane %v724, 2
        %v726 = vadd.f32 %v724, %v725
        %v727 = vrot.slane %v726, 1
        %v728 = vadd.f32 %v726, %v727
        %v729 = vmul.f32 %v728, 0.00390625
        %v730 = vpack.c.bf16 %v729, %v729
        %v731 = vld [vmem:[#allocation2] sm:$0xff]
        %v732 = vld [vmem:[#allocation2 + $0x8] sm:$0xff]
        %v733 = vld [vmem:[#allocation2 + $0x10] sm:$0xff]
        %v734 = vld [vmem:[#allocation2 + $0x18] sm:$0xff]
        %v735 = vld [vmem:[#allocation2 + $0x20] sm:$0xff]
        %v736 = vld [vmem:[#allocation2 + $0x28] sm:$0xff]
        %v737 = vld [vmem:[#allocation2 + $0x30] sm:$0xff]
        %v738 = vld [vmem:[#allocation2 + $0x38] sm:$0xff]
        %v739 = vld [vmem:[#allocation2 + $0x40] sm:$0xff]
        %v740 = vld [vmem:[#allocation2 + $0x48] sm:$0xff]
        %v741 = vld [vmem:[#allocation2 + $0x50] sm:$0xff]
        %v742 = vld [vmem:[#allocation2 + $0x58] sm:$0xff]
        %v743 = vld [vmem:[#allocation2 + $0x60] sm:$0xff]
        %v744 = vld [vmem:[#allocation2 + $0x68] sm:$0xff]
        %v745 = vld [vmem:[#allocation2 + $0x70] sm:$0xff]
        %v746 = vld [vmem:[#allocation2 + $0x78] sm:$0xff]
        %v747 = vld [vmem:[#allocation2 + $0x80] sm:$0xff]
        %v748 = vld [vmem:[#allocation2 + $0x88] sm:$0xff]
        %v749 = vld [vmem:[#allocation2 + $0x90] sm:$0xff]
        %v750 = vld [vmem:[#allocation2 + $0x98] sm:$0xff]
        %v751 = vld [vmem:[#allocation2 + $0xa0] sm:$0xff]
        %v752 = vld [vmem:[#allocation2 + $0xa8] sm:$0xff]
        %v753 = vld [vmem:[#allocation2 + $0xb0] sm:$0xff]
        %v754 = vld [vmem:[#allocation2 + $0xb8] sm:$0xff]
        %v755 = vld [vmem:[#allocation2 + $0xc0] sm:$0xff]
        %v756 = vld [vmem:[#allocation2 + $0xc8] sm:$0xff]
        %v757 = vld [vmem:[#allocation2 + $0xd0] sm:$0xff]
        %v758 = vld [vmem:[#allocation2 + $0xd8] sm:$0xff]
        %v759 = vld [vmem:[#allocation2 + $0xe0] sm:$0xff]
        %v760 = vld [vmem:[#allocation2 + $0xe8] sm:$0xff]
        %v761 = vld [vmem:[#allocation2 + $0xf0] sm:$0xff]
        %v762 = vld [vmem:[#allocation2 + $0xf8] sm:$0xff]
        %v763 = vld [vmem:[#allocation2 + $0x100] sm:$0xff]
        %v764 = vld [vmem:[#allocation2 + $0x108] sm:$0xff]
        %v765 = vld [vmem:[#allocation2 + $0x110] sm:$0xff]
        %v766 = vld [vmem:[#allocation2 + $0x118] sm:$0xff]
        %v767 = vld [vmem:[#allocation2 + $0x120] sm:$0xff]
        %v768 = vld [vmem:[#allocation2 + $0x128] sm:$0xff]
        %v769 = vld [vmem:[#allocation2 + $0x130] sm:$0xff]
        %v770 = vld [vmem:[#allocation2 + $0x138] sm:$0xff]
        %v771 = vld [vmem:[#allocation2 + $0x140] sm:$0xff]
        %v772 = vld [vmem:[#allocation2 + $0x148] sm:$0xff]
        %v773 = vld [vmem:[#allocation2 + $0x150] sm:$0xff]
        %v774 = vld [vmem:[#allocation2 + $0x158] sm:$0xff]
        %v775 = vld [vmem:[#allocation2 + $0x160] sm:$0xff]
        %v776 = vld [vmem:[#allocation2 + $0x168] sm:$0xff]
        %v777 = vld [vmem:[#allocation2 + $0x170] sm:$0xff]
        %v778 = vld [vmem:[#allocation2 + $0x178] sm:$0xff]
        %v779 = vld [vmem:[#allocation2 + $0x180] sm:$0xff]
        %v780 = vld [vmem:[#allocation2 + $0x188] sm:$0xff]
        %v781 = vld [vmem:[#allocation2 + $0x190] sm:$0xff]
        %v782 = vld [vmem:[#allocation2 + $0x198] sm:$0xff]
        %v783 = vld [vmem:[#allocation2 + $0x1a0] sm:$0xff]
        %v784 = vld [vmem:[#allocation2 + $0x1a8] sm:$0xff]
        %v785 = vld [vmem:[#allocation2 + $0x1b0] sm:$0xff]
        %v786 = vld [vmem:[#allocation2 + $0x1b8] sm:$0xff]
        %v787 = vld [vmem:[#allocation2 + $0x1c0] sm:$0xff]
        %v788 = vld [vmem:[#allocation2 + $0x1c8] sm:$0xff]
        %v789 = vld [vmem:[#allocation2 + $0x1d0] sm:$0xff]
        %v790 = vld [vmem:[#allocation2 + $0x1d8] sm:$0xff]
        %v791 = vld [vmem:[#allocation2 + $0x1e0] sm:$0xff]
        %v792 = vld [vmem:[#allocation2 + $0x1e8] sm:$0xff]
        %v793 = vld [vmem:[#allocation2 + $0x1f0] sm:$0xff]
        %v794 = vld [vmem:[#allocation2 + $0x1f8] sm:$0xff]
        %v795 = vld [vmem:[%s4] sm:$0xff]
        %v860 = vunpack.c.l.b16 %v731
        %v861 = vunpack.c.h.b16 %v731
        %v862 = vunpack.c.l.b16 %v732
        %v863 = vunpack.c.h.b16 %v732
        %v864 = vunpack.c.l.b16 %v733
        %v865 = vunpack.c.h.b16 %v733
        %v866 = vunpack.c.l.b16 %v734
        %v867 = vunpack.c.h.b16 %v734
        %v868 = vunpack.c.l.b16 %v735
        %v869 = vunpack.c.h.b16 %v735
        %v870 = vunpack.c.l.b16 %v736
        %v871 = vunpack.c.h.b16 %v736
        %v872 = vunpack.c.l.b16 %v737
        %v873 = vunpack.c.h.b16 %v737
        %v874 = vunpack.c.l.b16 %v738
        %v875 = vunpack.c.h.b16 %v738
        %v876 = vunpack.c.l.b16 %v739
        %v877 = vunpack.c.h.b16 %v739
        %v878 = vunpack.c.l.b16 %v740
        %v879 = vunpack.c.h.b16 %v740
        %v880 = vunpack.c.l.b16 %v741
        %v881 = vunpack.c.h.b16 %v741
        %v882 = vunpack.c.l.b16 %v742
        %v883 = vunpack.c.h.b16 %v742
        %v884 = vunpack.c.l.b16 %v743
        %v885 = vunpack.c.h.b16 %v743
        %v886 = vunpack.c.l.b16 %v744
        %v887 = vunpack.c.h.b16 %v744
        %v888 = vunpack.c.l.b16 %v745
        %v889 = vunpack.c.h.b16 %v745
        %v890 = vunpack.c.l.b16 %v746
        %v891 = vunpack.c.h.b16 %v746
        %v892 = vunpack.c.l.b16 %v747
        %v893 = vunpack.c.h.b16 %v747
        %v894 = vunpack.c.l.b16 %v748
        %v895 = vunpack.c.h.b16 %v748
        %v896 = vunpack.c.l.b16 %v749
        %v897 = vunpack.c.h.b16 %v749
        %v898 = vunpack.c.l.b16 %v750
        %v899 = vunpack.c.h.b16 %v750
        %v900 = vunpack.c.l.b16 %v751
        %v901 = vunpack.c.h.b16 %v751
        %v902 = vunpack.c.l.b16 %v752
        %v903 = vunpack.c.h.b16 %v752
        %v904 = vunpack.c.l.b16 %v753
        %v905 = vunpack.c.h.b16 %v753
        %v906 = vunpack.c.l.b16 %v754
        %v907 = vunpack.c.h.b16 %v754
        %v908 = vunpack.c.l.b16 %v755
        %v909 = vunpack.c.h.b16 %v755
        %v910 = vunpack.c.l.b16 %v756
        %v911 = vunpack.c.h.b16 %v756
        %v912 = vunpack.c.l.b16 %v757
        %v913 = vunpack.c.h.b16 %v757
        %v914 = vunpack.c.l.b16 %v758
        %v915 = vunpack.c.h.b16 %v758
        %v916 = vunpack.c.l.b16 %v759
        %v917 = vunpack.c.h.b16 %v759
        %v918 = vunpack.c.l.b16 %v760
        %v919 = vunpack.c.h.b16 %v760
        %v920 = vunpack.c.l.b16 %v761
        %v921 = vunpack.c.h.b16 %v761
        %v922 = vunpack.c.l.b16 %v762
        %v923 = vunpack.c.h.b16 %v762
        %v924 = vunpack.c.l.b16 %v763
        %v925 = vunpack.c.h.b16 %v763
        %v926 = vunpack.c.l.b16 %v764
        %v927 = vunpack.c.h.b16 %v764
        %v928 = vunpack.c.l.b16 %v765
        %v929 = vunpack.c.h.b16 %v765
        %v930 = vunpack.c.l.b16 %v766
        %v931 = vunpack.c.h.b16 %v766
        %v932 = vunpack.c.l.b16 %v767
        %v933 = vunpack.c.h.b16 %v767
        %v934 = vunpack.c.l.b16 %v768
        %v935 = vunpack.c.h.b16 %v768
        %v936 = vunpack.c.l.b16 %v769
        %v937 = vunpack.c.h.b16 %v769
        %v938 = vunpack.c.l.b16 %v770
        %v939 = vunpack.c.h.b16 %v770
        %v940 = vunpack.c.l.b16 %v771
        %v941 = vunpack.c.h.b16 %v771
        %v942 = vunpack.c.l.b16 %v772
        %v943 = vunpack.c.h.b16 %v772
        %v944 = vunpack.c.l.b16 %v773
        %v945 = vunpack.c.h.b16 %v773
        %v946 = vunpack.c.l.b16 %v774
        %v947 = vunpack.c.h.b16 %v774
        %v948 = vunpack.c.l.b16 %v775
        %v949 = vunpack.c.h.b16 %v775
        %v950 = vunpack.c.l.b16 %v776
        %v951 = vunpack.c.h.b16 %v776
        %v952 = vunpack.c.l.b16 %v777
        %v953 = vunpack.c.h.b16 %v777
        %v954 = vunpack.c.l.b16 %v778
        %v955 = vunpack.c.h.b16 %v778
        %v956 = vunpack.c.l.b16 %v779
        %v957 = vunpack.c.h.b16 %v779
        %v958 = vunpack.c.l.b16 %v780
        %v959 = vunpack.c.h.b16 %v780
        %v960 = vunpack.c.l.b16 %v781
        %v961 = vunpack.c.h.b16 %v781
        %v962 = vunpack.c.l.b16 %v782
        %v963 = vunpack.c.h.b16 %v782
        %v964 = vunpack.c.l.b16 %v783
        %v965 = vunpack.c.h.b16 %v783
        %v966 = vunpack.c.l.b16 %v784
        %v967 = vunpack.c.h.b16 %v784
        %v968 = vunpack.c.l.b16 %v785
        %v969 = vunpack.c.h.b16 %v785
        %v970 = vunpack.c.l.b16 %v786
        %v971 = vunpack.c.h.b16 %v786
        %v972 = vunpack.c.l.b16 %v787
        %v973 = vunpack.c.h.b16 %v787
        %v974 = vunpack.c.l.b16 %v788
        %v975 = vunpack.c.h.b16 %v788
        %v976 = vunpack.c.l.b16 %v789
        %v977 = vunpack.c.h.b16 %v789
        %v978 = vunpack.c.l.b16 %v790
        %v979 = vunpack.c.h.b16 %v790
        %v980 = vunpack.c.l.b16 %v791
        %v981 = vunpack.c.h.b16 %v791
        %v982 = vunpack.c.l.b16 %v792
        %v983 = vunpack.c.h.b16 %v792
        %v984 = vunpack.c.l.b16 %v793
        %v985 = vunpack.c.h.b16 %v793
        %v986 = vunpack.c.l.b16 %v794
        %v987 = vunpack.c.h.b16 %v794
        %v988 = vpack.c.b16 %v868, %v860
        %v989 = vpack.c.b16 %v869, %v861
        %v990 = vpack.c.b16 %v870, %v862
        %v991 = vpack.c.b16 %v871, %v863
        %v992 = vpack.c.b16 %v872, %v864
        %v993 = vpack.c.b16 %v873, %v865
        %v994 = vpack.c.b16 %v874, %v866
        %v995 = vpack.c.b16 %v875, %v867
        %v996 = vpack.c.b16 %v884, %v876
        %v997 = vpack.c.b16 %v885, %v877
        %v998 = vpack.c.b16 %v886, %v878
        %v999 = vpack.c.b16 %v887, %v879
        %v1000 = vpack.c.b16 %v888, %v880
        %v1001 = vpack.c.b16 %v889, %v881
        %v1002 = vpack.c.b16 %v890, %v882
        %v1003 = vpack.c.b16 %v891, %v883
        %v1004 = vpack.c.b16 %v900, %v892
        %v1005 = vpack.c.b16 %v901, %v893
        %v1006 = vpack.c.b16 %v902, %v894
        %v1007 = vpack.c.b16 %v903, %v895
        %v1008 = vpack.c.b16 %v904, %v896
        %v1009 = vpack.c.b16 %v905, %v897
        %v1010 = vpack.c.b16 %v906, %v898
        %v1011 = vpack.c.b16 %v907, %v899
        %v1012 = vpack.c.b16 %v916, %v908
        %v1013 = vpack.c.b16 %v917, %v909
        %v1014 = vpack.c.b16 %v918, %v910
        %v1015 = vpack.c.b16 %v919, %v911
        %v1016 = vpack.c.b16 %v920, %v912
        %v1017 = vpack.c.b16 %v921, %v913
        %v1018 = vpack.c.b16 %v922, %v914
        %v1019 = vpack.c.b16 %v923, %v915
        %v1020 = vpack.c.b16 %v932, %v924
        %v1021 = vpack.c.b16 %v933, %v925
        %v1022 = vpack.c.b16 %v934, %v926
        %v1023 = vpack.c.b16 %v935, %v927
        %v1024 = vpack.c.b16 %v936, %v928
        %v1025 = vpack.c.b16 %v937, %v929
        %v1026 = vpack.c.b16 %v938, %v930
        %v1027 = vpack.c.b16 %v939, %v931
        %v1028 = vpack.c.b16 %v948, %v940
        %v1029 = vpack.c.b16 %v949, %v941
        %v1030 = vpack.c.b16 %v950, %v942
        %v1031 = vpack.c.b16 %v951, %v943
        %v1032 = vpack.c.b16 %v952, %v944
        %v1033 = vpack.c.b16 %v953, %v945
        %v1034 = vpack.c.b16 %v954, %v946
        %v1035 = vpack.c.b16 %v955, %v947
        %v1036 = vpack.c.b16 %v964, %v956
        %v1037 = vpack.c.b16 %v965, %v957
        %v1038 = vpack.c.b16 %v966, %v958
        %v1039 = vpack.c.b16 %v967, %v959
        %v1040 = vpack.c.b16 %v968, %v960
        %v1041 = vpack.c.b16 %v969, %v961
        %v1042 = vpack.c.b16 %v970, %v962
        %v1043 = vpack.c.b16 %v971, %v963
        %v1044 = vpack.c.b16 %v980, %v972
        %v1045 = vpack.c.b16 %v981, %v973
        %v1046 = vpack.c.b16 %v982, %v974
        %v1047 = vpack.c.b16 %v983, %v975
        %v1048 = vpack.c.b16 %v984, %v976
        %v1049 = vpack.c.b16 %v985, %v977
        %v1050 = vpack.c.b16 %v986, %v978
        %v1051 = vpack.c.b16 %v987, %v979
        %v1117 = vlaneseq
        %v1118 = vshrl.u32 %v1117, 7
        %v1119 = vsub.s32 0, %v1118
        %v1120 = vrot.slane %v795, %v1119
        %v1121 = vlaneseq
        %v1122 = vshrl.u32 %v1121, 7
        %v1123 = vsub.s32 1, %v1122
        %v1124 = vrot.slane %v795, %v1123
        %v1125 = vlaneseq
        %v1126 = vshrl.u32 %v1125, 7
        %v1127 = vsub.s32 2, %v1126
        %v1128 = vrot.slane %v795, %v1127
        %v1129 = vlaneseq
        %v1130 = vshrl.u32 %v1129, 7
        %v1131 = vsub.s32 3, %v1130
        %v1132 = vrot.slane %v795, %v1131
        %v1133 = vlaneseq
        %v1134 = vshrl.u32 %v1133, 7
        %v1135 = vsub.s32 4, %v1134
        %v1136 = vrot.slane %v795, %v1135
        %v1137 = vlaneseq
        %v1138 = vshrl.u32 %v1137, 7
        %v1139 = vsub.s32 5, %v1138
        %v1140 = vrot.slane %v795, %v1139
        %v1141 = vlaneseq
        %v1142 = vshrl.u32 %v1141, 7
        %v1143 = vsub.s32 6, %v1142
        %v1144 = vrot.slane %v795, %v1143
        %v1145 = vlaneseq
        %v1146 = vshrl.u32 %v1145, 7
        %v1147 = vsub.s32 7, %v1146
        %v1148 = vrot.slane %v795, %v1147
        %1157 = vmatprep.subr.bf16.mxu0 %v989
        %1158 = vmatpush1.bf16.msra.mxu0 %v988
        %1159 = vmatprep.subr.bf16.mxu0 %v997
        %1160 = vmatpush1.bf16.msra.mxu0 %v996
        %1161 = vmatprep.subr.bf16.mxu0 %v1005
        %1162 = vmatpush1.bf16.msra.mxu0 %v1004
        %1163 = vmatprep.subr.bf16.mxu0 %v1013
        %1164 = vmatpush1.bf16.msra.mxu0 %v1012
        %1165 = vmatprep.subr.bf16.mxu0 %v1021
        %1166 = vmatpush1.bf16.msra.mxu0 %v1020
        %1167 = vmatprep.subr.bf16.mxu0 %v1029
        %1168 = vmatpush1.bf16.msra.mxu0 %v1028
        %1169 = vmatprep.subr.bf16.mxu0 %v1037
        %1170 = vmatpush1.bf16.msra.mxu0 %v1036
        %1171 = vmatprep.subr.bf16.mxu0 %v1045
        %1172 = vmatpush1.bf16.msra.mxu0 %v1044
        %1173 = vmatprep.subr.bf16.mxu0 0
        %1174 = vmatpush1.bf16.msra.mxu0 0
        %1175 = vmatprep.subr.bf16.mxu0 0
        %1176 = vmatpush1.bf16.msra.mxu0 0
        %1177 = vmatprep.subr.bf16.mxu0 0
        %1178 = vmatpush1.bf16.msra.mxu0 0
        %1179 = vmatprep.subr.bf16.mxu0 0
        %1180 = vmatpush1.bf16.msra.mxu0 0
        %1181 = vmatprep.subr.bf16.mxu0 0
        %1182 = vmatpush1.bf16.msra.mxu0 0
        %1183 = vmatprep.subr.bf16.mxu0 0
        %1184 = vmatpush1.bf16.msra.mxu0 0
        %1185 = vmatprep.subr.bf16.mxu0 0
        %1186 = vmatpush1.bf16.msra.mxu0 0
        %1187 = vmatprep.subr.bf16.mxu0 0
        %1188 = vmatpush1.bf16.msra.mxu0 0
        %1189 = vmatprep.mubr.bf16.mxu0 0
        %1190 = vmatmul.mubr.bf16.gmra.mrb[0].mxu0 %v730
        %v1191 = vpop.f32.mrb[0].mxu0
        %v1192 = vadd.f32 %v1120, %v1191
        %v1193 = vpop.f32.mrb[0].mxu0
        %v1194 = vadd.f32 %v1124, %v1193
        %v1195 = vpop.f32.mrb[0].mxu0
        %v1196 = vpop.f32.mrb[0].mxu0
        %1197 = vdwg.mxu0
        %1198 = vmatprep.subr.bf16.mxu0 %v991
        %1199 = vmatpush1.bf16.msra.mxu0 %v990
        %1200 = vmatprep.subr.bf16.mxu0 %v999
        %1201 = vmatpush1.bf16.msra.mxu0 %v998
        %1202 = vmatprep.subr.bf16.mxu0 %v1007
        %1203 = vmatpush1.bf16.msra.mxu0 %v1006
        %1204 = vmatprep.subr.bf16.mxu0 %v1015
        %1205 = vmatpush1.bf16.msra.mxu0 %v1014
        %1206 = vmatprep.subr.bf16.mxu0 %v1023
        %1207 = vmatpush1.bf16.msra.mxu0 %v1022
        %1208 = vmatprep.subr.bf16.mxu0 %v1031
        %1209 = vmatpush1.bf16.msra.mxu0 %v1030
        %1210 = vmatprep.subr.bf16.mxu0 %v1039
        %1211 = vmatpush1.bf16.msra.mxu0 %v1038
        %1212 = vmatprep.subr.bf16.mxu0 %v1047
        %1213 = vmatpush1.bf16.msra.mxu0 %v1046
        %1214 = vmatprep.subr.bf16.mxu0 0
        %1215 = vmatpush1.bf16.msra.mxu0 0
        %1216 = vmatprep.subr.bf16.mxu0 0
        %1217 = vmatpush1.bf16.msra.mxu0 0
        %1218 = vmatprep.subr.bf16.mxu0 0
        %1219 = vmatpush1.bf16.msra.mxu0 0
        %1220 = vmatprep.subr.bf16.mxu0 0
        %1221 = vmatpush1.bf16.msra.mxu0 0
        %1222 = vmatprep.subr.bf16.mxu0 0
        %1223 = vmatpush1.bf16.msra.mxu0 0
        %1224 = vmatprep.subr.bf16.mxu0 0
        %1225 = vmatpush1.bf16.msra.mxu0 0
        %1226 = vmatprep.subr.bf16.mxu0 0
        %1227 = vmatpush1.bf16.msra.mxu0 0
        %1228 = vmatprep.subr.bf16.mxu0 0
        %1229 = vmatpush1.bf16.msra.mxu0 0
        %1230 = vmatprep.mubr.bf16.mxu0 0
        %1231 = vmatmul.mubr.bf16.gmra.mrb[0].mxu0 %v730
        %v1232 = vpop.f32.mrb[0].mxu0
        %v1233 = vadd.f32 %v1128, %v1232
        %v1234 = vpop.f32.mrb[0].mxu0
        %v1235 = vadd.f32 %v1132, %v1234
        %v1236 = vpop.f32.mrb[0].mxu0
        %v1237 = vpop.f32.mrb[0].mxu0
        %1238 = vdwg.mxu0
        %1239 = vmatprep.subr.bf16.mxu0 %v993
        %1240 = vmatpush1.bf16.msra.mxu0 %v992
        %1241 = vmatprep.subr.bf16.mxu0 %v1001
        %1242 = vmatpush1.bf16.msra.mxu0 %v1000
        %1243 = vmatprep.subr.bf16.mxu0 %v1009
        %1244 = vmatpush1.bf16.msra.mxu0 %v1008
        %1245 = vmatprep.subr.bf16.mxu0 %v1017
        %1246 = vmatpush1.bf16.msra.mxu0 %v1016
        %1247 = vmatprep.subr.bf16.mxu0 %v1025
        %1248 = vmatpush1.bf16.msra.mxu0 %v1024
        %1249 = vmatprep.subr.bf16.mxu0 %v1033
        %1250 = vmatpush1.bf16.msra.mxu0 %v1032
        %1251 = vmatprep.subr.bf16.mxu0 %v1041
        %1252 = vmatpush1.bf16.msra.mxu0 %v1040
        %1253 = vmatprep.subr.bf16.mxu0 %v1049
        %1254 = vmatpush1.bf16.msra.mxu0 %v1048
        %1255 = vmatprep.subr.bf16.mxu0 0
        %1256 = vmatpush1.bf16.msra.mxu0 0
        %1257 = vmatprep.subr.bf16.mxu0 0
        %1258 = vmatpush1.bf16.msra.mxu0 0
        %1259 = vmatprep.subr.bf16.mxu0 0
        %1260 = vmatpush1.bf16.msra.mxu0 0
        %1261 = vmatprep.subr.bf16.mxu0 0
        %1262 = vmatpush1.bf16.msra.mxu0 0
        %1263 = vmatprep.subr.bf16.mxu0 0
        %1264 = vmatpush1.bf16.msra.mxu0 0
        %1265 = vmatprep.subr.bf16.mxu0 0
        %1266 = vmatpush1.bf16.msra.mxu0 0
        %1267 = vmatprep.subr.bf16.mxu0 0
        %1268 = vmatpush1.bf16.msra.mxu0 0
        %1269 = vmatprep.subr.bf16.mxu0 0
        %1270 = vmatpush1.bf16.msra.mxu0 0
        %1271 = vmatprep.mubr.bf16.mxu0 0
        %1272 = vmatmul.mubr.bf16.gmra.mrb[0].mxu0 %v730
        %v1273 = vpop.f32.mrb[0].mxu0
        %v1274 = vadd.f32 %v1136, %v1273
        %v1275 = vpop.f32.mrb[0].mxu0
        %v1276 = vadd.f32 %v1140, %v1275
        %v1277 = vpop.f32.mrb[0].mxu0
        %v1278 = vpop.f32.mrb[0].mxu0
        %1279 = vdwg.mxu0
        %1280 = vmatprep.subr.bf16.mxu0 %v995
        %1281 = vmatpush1.bf16.msra.mxu0 %v994
        %1282 = vmatprep.subr.bf16.mxu0 %v1003
        %1283 = vmatpush1.bf16.msra.mxu0 %v1002
        %1284 = vmatprep.subr.bf16.mxu0 %v1011
        %1285 = vmatpush1.bf16.msra.mxu0 %v1010
        %1286 = vmatprep.subr.bf16.mxu0 %v1019
        %1287 = vmatpush1.bf16.msra.mxu0 %v1018
        %1288 = vmatprep.subr.bf16.mxu0 %v1027
        %1289 = vmatpush1.bf16.msra.mxu0 %v1026
        %1290 = vmatprep.subr.bf16.mxu0 %v1035
        %1291 = vmatpush1.bf16.msra.mxu0 %v1034
        %1292 = vmatprep.subr.bf16.mxu0 %v1043
        %1293 = vmatpush1.bf16.msra.mxu0 %v1042
        %1294 = vmatprep.subr.bf16.mxu0 %v1051
        %1295 = vmatpush1.bf16.msra.mxu0 %v1050
        %1296 = vmatprep.subr.bf16.mxu0 0
        %1297 = vmatpush1.bf16.msra.mxu0 0
        %1298 = vmatprep.subr.bf16.mxu0 0
        %1299 = vmatpush1.bf16.msra.mxu0 0
        %1300 = vmatprep.subr.bf16.mxu0 0
        %1301 = vmatpush1.bf16.msra.mxu0 0
        %1302 = vmatprep.subr.bf16.mxu0 0
        %1303 = vmatpush1.bf16.msra.mxu0 0
        %1304 = vmatprep.subr.bf16.mxu0 0
        %1305 = vmatpush1.bf16.msra.mxu0 0
        %1306 = vmatprep.subr.bf16.mxu0 0
        %1307 = vmatpush1.bf16.msra.mxu0 0
        %1308 = vmatprep.subr.bf16.mxu0 0
        %1309 = vmatpush1.bf16.msra.mxu0 0
        %1310 = vmatprep.subr.bf16.mxu0 0
        %1311 = vmatpush1.bf16.msra.mxu0 0
        %1312 = vmatprep.mubr.bf16.mxu0 0
        %1313 = vmatmul.mubr.bf16.gmra.mrb[0].mxu0 %v730
        %v1314 = vpop.f32.mrb[0].mxu0
        %v1315 = vadd.f32 %v1144, %v1314
        %v1316 = vpop.f32.mrb[0].mxu0
        %v1317 = vadd.f32 %v1148, %v1316
        %v1318 = vpop.f32.mrb[0].mxu0
        %v1319 = vpop.f32.mrb[0].mxu0
        %1320 = vdwg.mxu0
        %v1321 = vmax.f32 %v1192, 0.0
        %v1322 = vmax.f32 %v1194, 0.0
        %v1323 = vmax.f32 %v1233, 0.0
        %v1324 = vmax.f32 %v1235, 0.0
        %v1325 = vmax.f32 %v1274, 0.0
        %v1326 = vmax.f32 %v1276, 0.0
        %v1327 = vmax.f32 %v1315, 0.0
        %v1328 = vmax.f32 %v1317, 0.0
        %v1329 = vpack.c.bf16 %v1321, %v1321
        %v1330 = vpack.c.bf16 %v1322, %v1322
        %v1331 = vpack.c.bf16 %v1323, %v1323
        %v1332 = vpack.c.bf16 %v1324, %v1324
        %v1333 = vpack.c.bf16 %v1325, %v1325
        %v1334 = vpack.c.bf16 %v1326, %v1326
        %v1335 = vpack.c.bf16 %v1327, %v1327
        %v1336 = vpack.c.bf16 %v1328, %v1328
        %v1337 = vld [vmem:[#allocation5] sm:$0xf]
        %v1338 = vld [vmem:[#allocation5 + $0x4] sm:$0xf]
        %v1339 = vld [vmem:[#allocation5 + $0x8] sm:$0xf]
        %v1340 = vld [vmem:[#allocation5 + $0xc] sm:$0xf]
        %v1341 = vld [vmem:[#allocation5 + $0x10] sm:$0xf]
        %v1342 = vld [vmem:[#allocation5 + $0x14] sm:$0xf]
        %v1343 = vld [vmem:[#allocation5 + $0x18] sm:$0xf]
        %v1344 = vld [vmem:[#allocation5 + $0x1c] sm:$0xf]
        %v1345 = vld [vmem:[#allocation5 + $0x20] sm:$0xf]
        %v1346 = vld [vmem:[#allocation5 + $0x24] sm:$0xf]
        %v1347 = vld [vmem:[#allocation5 + $0x28] sm:$0xf]
        %v1348 = vld [vmem:[#allocation5 + $0x2c] sm:$0xf]
        %v1349 = vld [vmem:[#allocation5 + $0x30] sm:$0xf]
        %v1350 = vld [vmem:[#allocation5 + $0x34] sm:$0xf]
        %v1351 = vld [vmem:[#allocation5 + $0x38] sm:$0xf]
        %v1352 = vld [vmem:[#allocation5 + $0x3c] sm:$0xf]
        %v1353 = vld [vmem:[#allocation5 + $0x40] sm:$0xf]
        %v1354 = vld [vmem:[#allocation5 + $0x44] sm:$0xf]
        %v1355 = vld [vmem:[#allocation5 + $0x48] sm:$0xf]
        %v1356 = vld [vmem:[#allocation5 + $0x4c] sm:$0xf]
        %v1357 = vld [vmem:[#allocation5 + $0x50] sm:$0xf]
        %v1358 = vld [vmem:[#allocation5 + $0x54] sm:$0xf]
        %v1359 = vld [vmem:[#allocation5 + $0x58] sm:$0xf]
        %v1360 = vld [vmem:[#allocation5 + $0x5c] sm:$0xf]
        %v1361 = vld [vmem:[#allocation5 + $0x60] sm:$0xf]
        %v1362 = vld [vmem:[#allocation5 + $0x64] sm:$0xf]
        %v1363 = vld [vmem:[#allocation5 + $0x68] sm:$0xf]
        %v1364 = vld [vmem:[#allocation5 + $0x6c] sm:$0xf]
        %v1365 = vld [vmem:[#allocation5 + $0x70] sm:$0xf]
        %v1366 = vld [vmem:[#allocation5 + $0x74] sm:$0xf]
        %v1367 = vld [vmem:[#allocation5 + $0x78] sm:$0xf]
        %v1368 = vld [vmem:[#allocation5 + $0x7c] sm:$0xf]
        %v1369 = vld [vmem:[#allocation5 + $0x80] sm:$0xf]
        %v1370 = vld [vmem:[#allocation5 + $0x84] sm:$0xf]
        %v1371 = vld [vmem:[#allocation5 + $0x88] sm:$0xf]
        %v1372 = vld [vmem:[#allocation5 + $0x8c] sm:$0xf]
        %v1373 = vld [vmem:[#allocation5 + $0x90] sm:$0xf]
        %v1374 = vld [vmem:[#allocation5 + $0x94] sm:$0xf]
        %v1375 = vld [vmem:[#allocation5 + $0x98] sm:$0xf]
        %v1376 = vld [vmem:[#allocation5 + $0x9c] sm:$0xf]
        %v1377 = vld [vmem:[#allocation5 + $0xa0] sm:$0xf]
        %v1378 = vld [vmem:[#allocation5 + $0xa4] sm:$0xf]
        %v1379 = vld [vmem:[#allocation5 + $0xa8] sm:$0xf]
        %v1380 = vld [vmem:[#allocation5 + $0xac] sm:$0xf]
        %v1381 = vld [vmem:[#allocation5 + $0xb0] sm:$0xf]
        %v1382 = vld [vmem:[#allocation5 + $0xb4] sm:$0xf]
        %v1383 = vld [vmem:[#allocation5 + $0xb8] sm:$0xf]
        %v1384 = vld [vmem:[#allocation5 + $0xbc] sm:$0xf]
        %v1385 = vld [vmem:[#allocation5 + $0xc0] sm:$0xf]
        %v1386 = vld [vmem:[#allocation5 + $0xc4] sm:$0xf]
        %v1387 = vld [vmem:[#allocation5 + $0xc8] sm:$0xf]
        %v1388 = vld [vmem:[#allocation5 + $0xcc] sm:$0xf]
        %v1389 = vld [vmem:[#allocation5 + $0xd0] sm:$0xf]
        %v1390 = vld [vmem:[#allocation5 + $0xd4] sm:$0xf]
        %v1391 = vld [vmem:[#allocation5 + $0xd8] sm:$0xf]
        %v1392 = vld [vmem:[#allocation5 + $0xdc] sm:$0xf]
        %v1393 = vld [vmem:[#allocation5 + $0xe0] sm:$0xf]
        %v1394 = vld [vmem:[#allocation5 + $0xe4] sm:$0xf]
        %v1395 = vld [vmem:[#allocation5 + $0xe8] sm:$0xf]
        %v1396 = vld [vmem:[#allocation5 + $0xec] sm:$0xf]
        %v1397 = vld [vmem:[#allocation5 + $0xf0] sm:$0xf]
        %v1398 = vld [vmem:[#allocation5 + $0xf4] sm:$0xf]
        %v1399 = vld [vmem:[#allocation5 + $0xf8] sm:$0xf]
        %v1400 = vld [vmem:[#allocation5 + $0xfc] sm:$0xf]
        %v1401 = vld [vmem:[#allocation5 + $0x100] sm:$0xf]
        %v1402 = vld [vmem:[#allocation5 + $0x104] sm:$0xf]
        %v1403 = vld [vmem:[#allocation5 + $0x108] sm:$0xf]
        %v1404 = vld [vmem:[#allocation5 + $0x10c] sm:$0xf]
        %v1405 = vld [vmem:[#allocation5 + $0x110] sm:$0xf]
        %v1406 = vld [vmem:[#allocation5 + $0x114] sm:$0xf]
        %v1407 = vld [vmem:[#allocation5 + $0x118] sm:$0xf]
        %v1408 = vld [vmem:[#allocation5 + $0x11c] sm:$0xf]
        %v1409 = vld [vmem:[#allocation5 + $0x120] sm:$0xf]
        %v1410 = vld [vmem:[#allocation5 + $0x124] sm:$0xf]
        %v1411 = vld [vmem:[#allocation5 + $0x128] sm:$0xf]
        %v1412 = vld [vmem:[#allocation5 + $0x12c] sm:$0xf]
        %v1413 = vld [vmem:[#allocation5 + $0x130] sm:$0xf]
        %v1414 = vld [vmem:[#allocation5 + $0x134] sm:$0xf]
        %v1415 = vld [vmem:[#allocation5 + $0x138] sm:$0xf]
        %v1416 = vld [vmem:[#allocation5 + $0x13c] sm:$0xf]
        %v1417 = vld [vmem:[#allocation5 + $0x140] sm:$0xf]
        %v1418 = vld [vmem:[#allocation5 + $0x144] sm:$0xf]
        %v1419 = vld [vmem:[#allocation5 + $0x148] sm:$0xf]
        %v1420 = vld [vmem:[#allocation5 + $0x14c] sm:$0xf]
        %v1421 = vld [vmem:[#allocation5 + $0x150] sm:$0xf]
        %v1422 = vld [vmem:[#allocation5 + $0x154] sm:$0xf]
        %v1423 = vld [vmem:[#allocation5 + $0x158] sm:$0xf]
        %v1424 = vld [vmem:[#allocation5 + $0x15c] sm:$0xf]
        %v1425 = vld [vmem:[#allocation5 + $0x160] sm:$0xf]
        %v1426 = vld [vmem:[#allocation5 + $0x164] sm:$0xf]
        %v1427 = vld [vmem:[#allocation5 + $0x168] sm:$0xf]
        %v1428 = vld [vmem:[#allocation5 + $0x16c] sm:$0xf]
        %v1429 = vld [vmem:[#allocation5 + $0x170] sm:$0xf]
        %v1430 = vld [vmem:[#allocation5 + $0x174] sm:$0xf]
        %v1431 = vld [vmem:[#allocation5 + $0x178] sm:$0xf]
        %v1432 = vld [vmem:[#allocation5 + $0x17c] sm:$0xf]
        %v1433 = vld [vmem:[#allocation5 + $0x180] sm:$0xf]
        %v1434 = vld [vmem:[#allocation5 + $0x184] sm:$0xf]
        %v1435 = vld [vmem:[#allocation5 + $0x188] sm:$0xf]
        %v1436 = vld [vmem:[#allocation5 + $0x18c] sm:$0xf]
        %v1437 = vld [vmem:[#allocation5 + $0x190] sm:$0xf]
        %v1438 = vld [vmem:[#allocation5 + $0x194] sm:$0xf]
        %v1439 = vld [vmem:[#allocation5 + $0x198] sm:$0xf]
        %v1440 = vld [vmem:[#allocation5 + $0x19c] sm:$0xf]
        %v1441 = vld [vmem:[#allocation5 + $0x1a0] sm:$0xf]
        %v1442 = vld [vmem:[#allocation5 + $0x1a4] sm:$0xf]
        %v1443 = vld [vmem:[#allocation5 + $0x1a8] sm:$0xf]
        %v1444 = vld [vmem:[#allocation5 + $0x1ac] sm:$0xf]
        %v1445 = vld [vmem:[#allocation5 + $0x1b0] sm:$0xf]
        %v1446 = vld [vmem:[#allocation5 + $0x1b4] sm:$0xf]
        %v1447 = vld [vmem:[#allocation5 + $0x1b8] sm:$0xf]
        %v1448 = vld [vmem:[#allocation5 + $0x1bc] sm:$0xf]
        %v1449 = vld [vmem:[#allocation5 + $0x1c0] sm:$0xf]
        %v1450 = vld [vmem:[#allocation5 + $0x1c4] sm:$0xf]
        %v1451 = vld [vmem:[#allocation5 + $0x1c8] sm:$0xf]
        %v1452 = vld [vmem:[#allocation5 + $0x1cc] sm:$0xf]
        %v1453 = vld [vmem:[#allocation5 + $0x1d0] sm:$0xf]
        %v1454 = vld [vmem:[#allocation5 + $0x1d4] sm:$0xf]
        %v1455 = vld [vmem:[#allocation5 + $0x1d8] sm:$0xf]
        %v1456 = vld [vmem:[#allocation5 + $0x1dc] sm:$0xf]
        %v1457 = vld [vmem:[#allocation5 + $0x1e0] sm:$0xf]
        %v1458 = vld [vmem:[#allocation5 + $0x1e4] sm:$0xf]
        %v1459 = vld [vmem:[#allocation5 + $0x1e8] sm:$0xf]
        %v1460 = vld [vmem:[#allocation5 + $0x1ec] sm:$0xf]
        %v1461 = vld [vmem:[#allocation5 + $0x1f0] sm:$0xf]
        %v1462 = vld [vmem:[#allocation5 + $0x1f4] sm:$0xf]
        %v1463 = vld [vmem:[#allocation5 + $0x1f8] sm:$0xf]
        %v1464 = vld [vmem:[#allocation5 + $0x1fc] sm:$0xf]
        %v1465 = vld [vmem:[%s6] sm:$0x1]
        %v1594 = vunpack.c.l.b16 %v1337
        %v1595 = vunpack.c.l.b16 %v1338
        %v1596 = vunpack.c.l.b16 %v1339
        %v1597 = vunpack.c.l.b16 %v1340
        %v1598 = vunpack.c.l.b16 %v1341
        %v1599 = vunpack.c.l.b16 %v1342
        %v1600 = vunpack.c.l.b16 %v1343
        %v1601 = vunpack.c.l.b16 %v1344
        %v1602 = vunpack.c.l.b16 %v1345
        %v1603 = vunpack.c.l.b16 %v1346
        %v1604 = vunpack.c.l.b16 %v1347
        %v1605 = vunpack.c.l.b16 %v1348
        %v1606 = vunpack.c.l.b16 %v1349
        %v1607 = vunpack.c.l.b16 %v1350
        %v1608 = vunpack.c.l.b16 %v1351
        %v1609 = vunpack.c.l.b16 %v1352
        %v1610 = vunpack.c.l.b16 %v1353
        %v1611 = vunpack.c.l.b16 %v1354
        %v1612 = vunpack.c.l.b16 %v1355
        %v1613 = vunpack.c.l.b16 %v1356
        %v1614 = vunpack.c.l.b16 %v1357
        %v1615 = vunpack.c.l.b16 %v1358
        %v1616 = vunpack.c.l.b16 %v1359
        %v1617 = vunpack.c.l.b16 %v1360
        %v1618 = vunpack.c.l.b16 %v1361
        %v1619 = vunpack.c.l.b16 %v1362
        %v1620 = vunpack.c.l.b16 %v1363
        %v1621 = vunpack.c.l.b16 %v1364
        %v1622 = vunpack.c.l.b16 %v1365
        %v1623 = vunpack.c.l.b16 %v1366
        %v1624 = vunpack.c.l.b16 %v1367
        %v1625 = vunpack.c.l.b16 %v1368
        %v1626 = vunpack.c.l.b16 %v1369
        %v1627 = vunpack.c.l.b16 %v1370
        %v1628 = vunpack.c.l.b16 %v1371
        %v1629 = vunpack.c.l.b16 %v1372
        %v1630 = vunpack.c.l.b16 %v1373
        %v1631 = vunpack.c.l.b16 %v1374
        %v1632 = vunpack.c.l.b16 %v1375
        %v1633 = vunpack.c.l.b16 %v1376
        %v1634 = vunpack.c.l.b16 %v1377
        %v1635 = vunpack.c.l.b16 %v1378
        %v1636 = vunpack.c.l.b16 %v1379
        %v1637 = vunpack.c.l.b16 %v1380
        %v1638 = vunpack.c.l.b16 %v1381
        %v1639 = vunpack.c.l.b16 %v1382
        %v1640 = vunpack.c.l.b16 %v1383
        %v1641 = vunpack.c.l.b16 %v1384
        %v1642 = vunpack.c.l.b16 %v1385
        %v1643 = vunpack.c.l.b16 %v1386
        %v1644 = vunpack.c.l.b16 %v1387
        %v1645 = vunpack.c.l.b16 %v1388
        %v1646 = vunpack.c.l.b16 %v1389
        %v1647 = vunpack.c.l.b16 %v1390
        %v1648 = vunpack.c.l.b16 %v1391
        %v1649 = vunpack.c.l.b16 %v1392
        %v1650 = vunpack.c.l.b16 %v1393
        %v1651 = vunpack.c.l.b16 %v1394
        %v1652 = vunpack.c.l.b16 %v1395
        %v1653 = vunpack.c.l.b16 %v1396
        %v1654 = vunpack.c.l.b16 %v1397
        %v1655 = vunpack.c.l.b16 %v1398
        %v1656 = vunpack.c.l.b16 %v1399
        %v1657 = vunpack.c.l.b16 %v1400
        %v1658 = vunpack.c.l.b16 %v1401
        %v1659 = vunpack.c.l.b16 %v1402
        %v1660 = vunpack.c.l.b16 %v1403
        %v1661 = vunpack.c.l.b16 %v1404
        %v1662 = vunpack.c.l.b16 %v1405
        %v1663 = vunpack.c.l.b16 %v1406
        %v1664 = vunpack.c.l.b16 %v1407
        %v1665 = vunpack.c.l.b16 %v1408
        %v1666 = vunpack.c.l.b16 %v1409
        %v1667 = vunpack.c.l.b16 %v1410
        %v1668 = vunpack.c.l.b16 %v1411
        %v1669 = vunpack.c.l.b16 %v1412
        %v1670 = vunpack.c.l.b16 %v1413
        %v1671 = vunpack.c.l.b16 %v1414
        %v1672 = vunpack.c.l.b16 %v1415
        %v1673 = vunpack.c.l.b16 %v1416
        %v1674 = vunpack.c.l.b16 %v1417
        %v1675 = vunpack.c.l.b16 %v1418
        %v1676 = vunpack.c.l.b16 %v1419
        %v1677 = vunpack.c.l.b16 %v1420
        %v1678 = vunpack.c.l.b16 %v1421
        %v1679 = vunpack.c.l.b16 %v1422
        %v1680 = vunpack.c.l.b16 %v1423
        %v1681 = vunpack.c.l.b16 %v1424
        %v1682 = vunpack.c.l.b16 %v1425
        %v1683 = vunpack.c.l.b16 %v1426
        %v1684 = vunpack.c.l.b16 %v1427
        %v1685 = vunpack.c.l.b16 %v1428
        %v1686 = vunpack.c.l.b16 %v1429
        %v1687 = vunpack.c.l.b16 %v1430
        %v1688 = vunpack.c.l.b16 %v1431
        %v1689 = vunpack.c.l.b16 %v1432
        %v1690 = vunpack.c.l.b16 %v1433
        %v1691 = vunpack.c.l.b16 %v1434
        %v1692 = vunpack.c.l.b16 %v1435
        %v1693 = vunpack.c.l.b16 %v1436
        %v1694 = vunpack.c.l.b16 %v1437
        %v1695 = vunpack.c.l.b16 %v1438
        %v1696 = vunpack.c.l.b16 %v1439
        %v1697 = vunpack.c.l.b16 %v1440
        %v1698 = vunpack.c.l.b16 %v1441
        %v1699 = vunpack.c.l.b16 %v1442
        %v1700 = vunpack.c.l.b16 %v1443
        %v1701 = vunpack.c.l.b16 %v1444
        %v1702 = vunpack.c.l.b16 %v1445
        %v1703 = vunpack.c.l.b16 %v1446
        %v1704 = vunpack.c.l.b16 %v1447
        %v1705 = vunpack.c.l.b16 %v1448
        %v1706 = vunpack.c.l.b16 %v1449
        %v1707 = vunpack.c.l.b16 %v1450
        %v1708 = vunpack.c.l.b16 %v1451
        %v1709 = vunpack.c.l.b16 %v1452
        %v1710 = vunpack.c.l.b16 %v1453
        %v1711 = vunpack.c.l.b16 %v1454
        %v1712 = vunpack.c.l.b16 %v1455
        %v1713 = vunpack.c.l.b16 %v1456
        %v1714 = vunpack.c.l.b16 %v1457
        %v1715 = vunpack.c.l.b16 %v1458
        %v1716 = vunpack.c.l.b16 %v1459
        %v1717 = vunpack.c.l.b16 %v1460
        %v1718 = vunpack.c.l.b16 %v1461
        %v1719 = vunpack.c.l.b16 %v1462
        %v1720 = vunpack.c.l.b16 %v1463
        %v1721 = vunpack.c.l.b16 %v1464
        %v1722 = vpack.c.b16 %v1595, %v1594
        %v1723 = vpack.c.b16 %v1597, %v1596
        %v1724 = vpack.c.b16 %v1599, %v1598
        %v1725 = vpack.c.b16 %v1601, %v1600
        %v1726 = vpack.c.b16 %v1603, %v1602
        %v1727 = vpack.c.b16 %v1605, %v1604
        %v1728 = vpack.c.b16 %v1607, %v1606
        %v1729 = vpack.c.b16 %v1609, %v1608
        %v1730 = vpack.c.b16 %v1611, %v1610
        %v1731 = vpack.c.b16 %v1613, %v1612
        %v1732 = vpack.c.b16 %v1615, %v1614
        %v1733 = vpack.c.b16 %v1617, %v1616
        %v1734 = vpack.c.b16 %v1619, %v1618
        %v1735 = vpack.c.b16 %v1621, %v1620
        %v1736 = vpack.c.b16 %v1623, %v1622
        %v1737 = vpack.c.b16 %v1625, %v1624
        %v1738 = vpack.c.b16 %v1627, %v1626
        %v1739 = vpack.c.b16 %v1629, %v1628
        %v1740 = vpack.c.b16 %v1631, %v1630
        %v1741 = vpack.c.b16 %v1633, %v1632
        %v1742 = vpack.c.b16 %v1635, %v1634
        %v1743 = vpack.c.b16 %v1637, %v1636
        %v1744 = vpack.c.b16 %v1639, %v1638
        %v1745 = vpack.c.b16 %v1641, %v1640
        %v1746 = vpack.c.b16 %v1643, %v1642
        %v1747 = vpack.c.b16 %v1645, %v1644
        %v1748 = vpack.c.b16 %v1647, %v1646
        %v1749 = vpack.c.b16 %v1649, %v1648
        %v1750 = vpack.c.b16 %v1651, %v1650
        %v1751 = vpack.c.b16 %v1653, %v1652
        %v1752 = vpack.c.b16 %v1655, %v1654
        %v1753 = vpack.c.b16 %v1657, %v1656
        %v1754 = vpack.c.b16 %v1659, %v1658
        %v1755 = vpack.c.b16 %v1661, %v1660
        %v1756 = vpack.c.b16 %v1663, %v1662
        %v1757 = vpack.c.b16 %v1665, %v1664
        %v1758 = vpack.c.b16 %v1667, %v1666
        %v1759 = vpack.c.b16 %v1669, %v1668
        %v1760 = vpack.c.b16 %v1671, %v1670
        %v1761 = vpack.c.b16 %v1673, %v1672
        %v1762 = vpack.c.b16 %v1675, %v1674
        %v1763 = vpack.c.b16 %v1677, %v1676
        %v1764 = vpack.c.b16 %v1679, %v1678
        %v1765 = vpack.c.b16 %v1681, %v1680
        %v1766 = vpack.c.b16 %v1683, %v1682
        %v1767 = vpack.c.b16 %v1685, %v1684
        %v1768 = vpack.c.b16 %v1687, %v1686
        %v1769 = vpack.c.b16 %v1689, %v1688
        %v1770 = vpack.c.b16 %v1691, %v1690
        %v1771 = vpack.c.b16 %v1693, %v1692
        %v1772 = vpack.c.b16 %v1695, %v1694
        %v1773 = vpack.c.b16 %v1697, %v1696
        %v1774 = vpack.c.b16 %v1699, %v1698
        %v1775 = vpack.c.b16 %v1701, %v1700
        %v1776 = vpack.c.b16 %v1703, %v1702
        %v1777 = vpack.c.b16 %v1705, %v1704
        %v1778 = vpack.c.b16 %v1707, %v1706
        %v1779 = vpack.c.b16 %v1709, %v1708
        %v1780 = vpack.c.b16 %v1711, %v1710
        %v1781 = vpack.c.b16 %v1713, %v1712
        %v1782 = vpack.c.b16 %v1715, %v1714
        %v1783 = vpack.c.b16 %v1717, %v1716
        %v1784 = vpack.c.b16 %v1719, %v1718
        %v1785 = vpack.c.b16 %v1721, %v1720
        %1850 = vmatprep.subr.bf16.mxu0 0
        %1851 = vmatpush1.bf16.msra.mxu0 %v1722
        %1852 = vmatprep.subr.bf16.mxu0 0
        %1853 = vmatpush1.bf16.msra.mxu0 %v1723
        %1854 = vmatprep.subr.bf16.mxu0 0
        %1855 = vmatpush1.bf16.msra.mxu0 %v1724
        %1856 = vmatprep.subr.bf16.mxu0 0
        %1857 = vmatpush1.bf16.msra.mxu0 %v1725
        %1858 = vmatprep.subr.bf16.mxu0 0
        %1859 = vmatpush1.bf16.msra.mxu0 %v1726
        %1860 = vmatprep.subr.bf16.mxu0 0
        %1861 = vmatpush1.bf16.msra.mxu0 %v1727
        %1862 = vmatprep.subr.bf16.mxu0 0
        %1863 = vmatpush1.bf16.msra.mxu0 %v1728
        %1864 = vmatprep.subr.bf16.mxu0 0
        %1865 = vmatpush1.bf16.msra.mxu0 %v1729
        %1866 = vmatprep.subr.bf16.mxu0 0
        %1867 = vmatpush1.bf16.msra.mxu0 %v1730
        %1868 = vmatprep.subr.bf16.mxu0 0
        %1869 = vmatpush1.bf16.msra.mxu0 %v1731
        %1870 = vmatprep.subr.bf16.mxu0 0
        %1871 = vmatpush1.bf16.msra.mxu0 %v1732
        %1872 = vmatprep.subr.bf16.mxu0 0
        %1873 = vmatpush1.bf16.msra.mxu0 %v1733
        %1874 = vmatprep.subr.bf16.mxu0 0
        %1875 = vmatpush1.bf16.msra.mxu0 %v1734
        %1876 = vmatprep.subr.bf16.mxu0 0
        %1877 = vmatpush1.bf16.msra.mxu0 %v1735
        %1878 = vmatprep.subr.bf16.mxu0 0
        %1879 = vmatpush1.bf16.msra.mxu0 %v1736
        %1880 = vmatprep.subr.bf16.mxu0 0
        %1881 = vmatpush1.bf16.msra.mxu0 %v1737
        %1882 = vmatprep.mubr.bf16.mxu0 %v1330
        %1883 = vmatmul.mubr.bf16.gmra.mrb[0].mxu0 %v1329
        %v1884 = vpop.f32.mrb[0].mxu0
        %v1885 = vadd.f32 %v1465, %v1884
        %v1886 = vpop.f32.mrb[0].mxu0
        %v1887 = vpop.f32.mrb[0].mxu0
        %v1888 = vpop.f32.mrb[0].mxu0
        %1889 = vdwg.mxu0
        %1890 = vmatprep.subr.bf16.mxu0 0
        %1891 = vmatpush1.bf16.msra.mxu0 %v1738
        %1892 = vmatprep.subr.bf16.mxu0 0
        %1893 = vmatpush1.bf16.msra.mxu0 %v1739
        %1894 = vmatprep.subr.bf16.mxu0 0
        %1895 = vmatpush1.bf16.msra.mxu0 %v1740
        %1896 = vmatprep.subr.bf16.mxu0 0
        %1897 = vmatpush1.bf16.msra.mxu0 %v1741
        %1898 = vmatprep.subr.bf16.mxu0 0
        %1899 = vmatpush1.bf16.msra.mxu0 %v1742
        %1900 = vmatprep.subr.bf16.mxu0 0
        %1901 = vmatpush1.bf16.msra.mxu0 %v1743
        %1902 = vmatprep.subr.bf16.mxu0 0
        %1903 = vmatpush1.bf16.msra.mxu0 %v1744
        %1904 = vmatprep.subr.bf16.mxu0 0
        %1905 = vmatpush1.bf16.msra.mxu0 %v1745
        %1906 = vmatprep.subr.bf16.mxu0 0
        %1907 = vmatpush1.bf16.msra.mxu0 %v1746
        %1908 = vmatprep.subr.bf16.mxu0 0
        %1909 = vmatpush1.bf16.msra.mxu0 %v1747
        %1910 = vmatprep.subr.bf16.mxu0 0
        %1911 = vmatpush1.bf16.msra.mxu0 %v1748
        %1912 = vmatprep.subr.bf16.mxu0 0
        %1913 = vmatpush1.bf16.msra.mxu0 %v1749
        %1914 = vmatprep.subr.bf16.mxu0 0
        %1915 = vmatpush1.bf16.msra.mxu0 %v1750
        %1916 = vmatprep.subr.bf16.mxu0 0
        %1917 = vmatpush1.bf16.msra.mxu0 %v1751
        %1918 = vmatprep.subr.bf16.mxu0 0
        %1919 = vmatpush1.bf16.msra.mxu0 %v1752
        %1920 = vmatprep.subr.bf16.mxu0 0
        %1921 = vmatpush1.bf16.msra.mxu0 %v1753
        %1922 = vmatprep.mubr.bf16.mxu0 %v1332
        %1923 = vmatmul.mubr.bf16.gmra.mrb[0].mxu0 %v1331
        %v1924 = vpop.f32.mrb[0].mxu0
        %v1925 = vadd.f32 %v1885, %v1924
        %v1926 = vpop.f32.mrb[0].mxu0
        %v1927 = vpop.f32.mrb[0].mxu0
        %v1928 = vpop.f32.mrb[0].mxu0
        %1929 = vdwg.mxu0
        %1930 = vmatprep.subr.bf16.mxu0 0
        %1931 = vmatpush1.bf16.msra.mxu0 %v1754
        %1932 = vmatprep.subr.bf16.mxu0 0
        %1933 = vmatpush1.bf16.msra.mxu0 %v1755
        %1934 = vmatprep.subr.bf16.mxu0 0
        %1935 = vmatpush1.bf16.msra.mxu0 %v1756
        %1936 = vmatprep.subr.bf16.mxu0 0
        %1937 = vmatpush1.bf16.msra.mxu0 %v1757
        %1938 = vmatprep.subr.bf16.mxu0 0
        %1939 = vmatpush1.bf16.msra.mxu0 %v1758
        %1940 = vmatprep.subr.bf16.mxu0 0
        %1941 = vmatpush1.bf16.msra.mxu0 %v1759
        %1942 = vmatprep.subr.bf16.mxu0 0
        %1943 = vmatpush1.bf16.msra.mxu0 %v1760
        %1944 = vmatprep.subr.bf16.mxu0 0
        %1945 = vmatpush1.bf16.msra.mxu0 %v1761
        %1946 = vmatprep.subr.bf16.mxu0 0
        %1947 = vmatpush1.bf16.msra.mxu0 %v1762
        %1948 = vmatprep.subr.bf16.mxu0 0
        %1949 = vmatpush1.bf16.msra.mxu0 %v1763
        %1950 = vmatprep.subr.bf16.mxu0 0
        %1951 = vmatpush1.bf16.msra.mxu0 %v1764
        %1952 = vmatprep.subr.bf16.mxu0 0
        %1953 = vmatpush1.bf16.msra.mxu0 %v1765
        %1954 = vmatprep.subr.bf16.mxu0 0
        %1955 = vmatpush1.bf16.msra.mxu0 %v1766
        %1956 = vmatprep.subr.bf16.mxu0 0
        %1957 = vmatpush1.bf16.msra.mxu0 %v1767
        %1958 = vmatprep.subr.bf16.mxu0 0
        %1959 = vmatpush1.bf16.msra.mxu0 %v1768
        %1960 = vmatprep.subr.bf16.mxu0 0
        %1961 = vmatpush1.bf16.msra.mxu0 %v1769
        %1962 = vmatprep.mubr.bf16.mxu0 %v1334
        %1963 = vmatmul.mubr.bf16.gmra.mrb[0].mxu0 %v1333
        %v1964 = vpop.f32.mrb[0].mxu0
        %v1965 = vadd.f32 %v1925, %v1964
        %v1966 = vpop.f32.mrb[0].mxu0
        %v1967 = vpop.f32.mrb[0].mxu0
        %v1968 = vpop.f32.mrb[0].mxu0
        %1969 = vdwg.mxu0
        %1970 = vmatprep.subr.bf16.mxu0 0
        %1971 = vmatpush1.bf16.msra.mxu0 %v1770
        %1972 = vmatprep.subr.bf16.mxu0 0
        %1973 = vmatpush1.bf16.msra.mxu0 %v1771
        %1974 = vmatprep.subr.bf16.mxu0 0
        %1975 = vmatpush1.bf16.msra.mxu0 %v1772
        %1976 = vmatprep.subr.bf16.mxu0 0
        %1977 = vmatpush1.bf16.msra.mxu0 %v1773
        %1978 = vmatprep.subr.bf16.mxu0 0
        %1979 = vmatpush1.bf16.msra.mxu0 %v1774
        %1980 = vmatprep.subr.bf16.mxu0 0
        %1981 = vmatpush1.bf16.msra.mxu0 %v1775
        %1982 = vmatprep.subr.bf16.mxu0 0
        %1983 = vmatpush1.bf16.msra.mxu0 %v1776
        %1984 = vmatprep.subr.bf16.mxu0 0
        %1985 = vmatpush1.bf16.msra.mxu0 %v1777
        %1986 = vmatprep.subr.bf16.mxu0 0
        %1987 = vmatpush1.bf16.msra.mxu0 %v1778
        %1988 = vmatprep.subr.bf16.mxu0 0
        %1989 = vmatpush1.bf16.msra.mxu0 %v1779
        %1990 = vmatprep.subr.bf16.mxu0 0
        %1991 = vmatpush1.bf16.msra.mxu0 %v1780
        %1992 = vmatprep.subr.bf16.mxu0 0
        %1993 = vmatpush1.bf16.msra.mxu0 %v1781
        %1994 = vmatprep.subr.bf16.mxu0 0
        %1995 = vmatpush1.bf16.msra.mxu0 %v1782
        %1996 = vmatprep.subr.bf16.mxu0 0
        %1997 = vmatpush1.bf16.msra.mxu0 %v1783
        %1998 = vmatprep.subr.bf16.mxu0 0
        %1999 = vmatpush1.bf16.msra.mxu0 %v1784
        %2000 = vmatprep.subr.bf16.mxu0 0
        %2001 = vmatpush1.bf16.msra.mxu0 %v1785
        %2002 = vmatprep.mubr.bf16.mxu0 %v1336
        %2003 = vmatmul.mubr.bf16.gmra.mrb[0].mxu0 %v1335
        %v2004 = vpop.f32.mrb[0].mxu0
        %v2005 = vadd.f32 %v1965, %v2004
        %v2006 = vpop.f32.mrb[0].mxu0
        %v2007 = vpop.f32.mrb[0].mxu0
        %v2008 = vpop.f32.mrb[0].mxu0
        %2009 = vdwg.mxu0
        %2010 = vst [vmem:[%s300] sm:$0x1] %v2005
        %s2011 = sand.u32 %s183, 1
        %s2012 = scalar_lea.sflag [#allocation4], %s2011
        %s2013 = sand.u32 %s183, 1
        %s2014 = scalar_lea.vmem [#allocation7], %s2013
        // Predicated region
        $region57: #{tpu_custom_call.1} parent=47 // pred_check
          %p2015 = pneg %p193
        $region58: #{tpu_custom_call.1} parent=47 // pred_check_branch
          %2017 = sbr.rel (%p2015) target = $region60
        $region59: #{tpu_custom_call.1} parent=47 // pred_region
          %s2019 = ssub.s32 16, 16
          %2020 = vsyncadd %s2012, %s2019
          %s2021 = smul.addr %s23, 16
          %s2022 = scalar_lea.hbm %s7, %s2021
          %s2024 = sshll.u32 %s2014, 4
          %s2025 = int_to_ptr.vmem [resolvable:$true] %s2024
          %2027 = dma.vmem_to_hbm [thread:$0]  %s2025, 16, %s2022, %s2012
        $region60: #{tpu_custom_call.1} parent=47 // pred_fallthru
          _
      $region48: #{tpu_custom_call.1} parent=5 // pred_fallthru
        _
      %p2028 = scmp.le.s32.totalorder 2, %s18
      // Predicated region
      $region61: #{tpu_custom_call.1} parent=5 // pred_check
        %p2029 = pneg %p2028
      $region62: #{tpu_custom_call.1} parent=5 // pred_check_branch
        %2031 = sbr.rel (%p2029) target = $region64
      $region63: #{tpu_custom_call.1} parent=5 // pred_region
        %s2032 = ssub.s32 %s18, 2
        // Predicated region
        $region65: #{tpu_custom_call.1} parent=63 // pred_check
          %p2033 = pneg %p199
        $region66: #{tpu_custom_call.1} parent=63 // pred_check_branch
          %2035 = sbr.rel (%p2033) target = $region68
        $region67: #{tpu_custom_call.1} parent=63 // pred_region
          %s2036 = sand.u32 %s184, 1
          %s2037 = scalar_lea.sflag [#allocation4], %s2036
          %s2038 = sand.u32 %s184, 1
          %s2039 = scalar_lea.vmem [#allocation7], %s2038
          %2040 = dma.done %s2037, 16
        $region68: #{tpu_custom_call.1} parent=63 // pred_fallthru
          _
      $region64: #{tpu_custom_call.1} parent=5 // pred_fallthru
        _
    $region6: #{tpu_custom_call.1} parent=1 // loop_footer
      %s22 = sadd.s32 1, %s18
    $region7: #{tpu_custom_call.1} parent=1 // loop_footer_branch
      %17 = sbr.rel target = $region3
    $region8: #{tpu_custom_call.1} parent=1 // loop_exit
      _
    %2041 = vsyncpa [#allocation3], 1
    %s2042 = scalar_lea.sflag [#allocation3], 1
    %2043 = vsyncpa %s2042, 1
    %2044 = vsyncpa [#allocation6], 1
    %2045 = vsyncpa [#allocation4], 1
    %s2046 = scalar_lea.sflag [#allocation4], 1
    %2047 = vsyncpa %s2046, 1

</llo_original>
